<compile_context>
chip_gen: v7x
topology: tpu7x:2x2x1
jax: 0.10.0
libtpu: 0.0.40
codegen_flags: <defaults>
</compile_context>

<pallas_src>
import functools

import jax
import jax.numpy as jnp
from jax.experimental import pallas as pl
from jax.experimental.pallas import tpu as pltpu

KS1, ST1 = 8, 4   # conv1 kernel / stride (from the PyTorch module)
KS2, ST2 = 4, 2   # conv2 kernel / stride


def conv2d_size_out(size, kernel_size, stride):
    return (size - (kernel_size - 1) - 1) // stride + 1


# ------------------------------------------------------------------ fused kernel

def _dqn_fused_kernel(p1_ref, w1_ref, b1_ref, w2_ref, b2_ref, hw_ref, hb_ref,
                      o_ref, y1_ref, p2_ref, *, n, c1, c2, oh1, ow1, oh2, ow2,
                      n_out):
    """Whole DQN forward on VMEM-resident data.

    p1_ref : (OW1*N*OH1, C*KS1*KS1)   conv1 im2col patches, rows ordered (w, b, h)
    w1_ref : (C*KS1*KS1, C1)          conv1 weight, BN1 scale folded into columns
    b1_ref : (1, C1)                  BN1 shift (conv bias folded through BN)
    w2_ref : (KS2*KS2*C1, C2)         conv2 weight (rows in (kh, kw, c) order), BN2 folded
    b2_ref : (1, C2)                  BN2 shift
    hw_ref : (OH2*OW2*C2, n_out)      head weight, rows permuted to (oh, ow, c) order
    hb_ref : (1, n_out)               head bias
    o_ref  : (N, n_out)               Q-values
    y1_ref : (N*OH1, OW1*C1)          VMEM scratch: conv1 activation, channels-last
    p2_ref : (OH2*OW2*N, KS2*KS2*C1)  VMEM scratch: conv2 im2col patches
    """
    # ---- conv1 + bn1 + relu: ONE MXU matmul over every output position.
    # p1 rows are ordered (w, b, h), so block w of the result is exactly the
    # channels-last scratch column block [w*C1, (w+1)*C1) with rows (b*OH1 + h).
    y1 = jnp.maximum(
        jnp.dot(p1_ref[...], w1_ref[...], preferred_element_type=jnp.float32)
        + b1_ref[...], 0.0)                                    # (OW1*N*OH1, C1)
    rows = n * oh1
    for w in range(ow1):
        y1_ref[:, w * c1:(w + 1) * c1] = y1[w * rows:(w + 1) * rows, :]

    # ---- conv2 im2col: gather (1, KS2*C1) lane windows of the VMEM-resident
    # activation into the patch scratch.  Patch rows are ordered (oh, ow, b);
    # the kh pieces are contiguous rows of y1_ref and lane-aligned in p2_ref.
    kw_lanes = KS2 * c1
    for oh in range(oh2):
        for ow in range(ow2):
            for b in range(n):
                r = (oh * ow2 + ow) * n + b
                for kh in range(KS2):
                    p2_ref[pl.ds(r, 1), pl.ds(kh * kw_lanes, kw_lanes)] = \
                        y1_ref[pl.ds(b * oh1 + ST2 * oh + kh, 1),
                               pl.ds(ST2 * ow * c1, kw_lanes)]

    # ---- conv2 + bn2 + relu: ONE MXU matmul over every patch.
    z = jnp.maximum(
        jnp.dot(p2_ref[...], w2_ref[...], preferred_element_type=jnp.float32)
        + b2_ref[...], 0.0)                                    # (OH2*OW2*N, C2)

    # ---- linear head, accumulated per conv2 output position (head weight rows
    # were pre-permuted to (oh, ow, c) order, so no in-kernel reshape is needed).
    out = jnp.zeros((n, n_out), jnp.float32) + hb_ref[...]
    for pos in range(oh2 * ow2):
        out = out + jnp.dot(z[pos * n:(pos + 1) * n, :],
                            hw_ref[pos * c2:(pos + 1) * c2, :],
                            preferred_element_type=jnp.float32)
    o_ref[...] = out.astype(o_ref.dtype)


# ------------------------------------------------------------------ param folding

def fold_params(params, eps=1e-5):
    """Fold eval-mode BatchNorm into the conv weights/shifts and pre-permute every
    weight matrix into the layout the fused kernel consumes (done once)."""
    def scale_shift(bias, bn):
        s = bn["gamma"] / jnp.sqrt(bn["var"] + eps)
        return s, (bias - bn["mean"]) * s + bn["beta"]

    o1 = params["conv1_w"].shape[0]
    o2 = params["conv2_w"].shape[0]
    n_out, lin_in = params["head_w"].shape

    s1, t1 = scale_shift(params["conv1_b"], params["bn1"])
    s2, t2 = scale_shift(params["conv2_b"], params["bn2"])

    # conv1: (O, C, KH, KW) -> (C*KH*KW, O); BN1 scale folded into columns.
    w1 = params["conv1_w"].reshape(o1, -1).T * s1[None, :]
    # conv2: (O, I, KH, KW) -> (KH, KW, I, O) -> (KH*KW*I, O); BN2 scale folded.
    w2 = params["conv2_w"].transpose(2, 3, 1, 0).reshape(-1, o2) * s2[None, :]
    # head: PyTorch flattens NCHW -> index (c, oh, ow); the kernel produces
    # per-(oh, ow) blocks of C2 channels, so reorder rows from (c, pos) to (pos, c).
    n_pos = lin_in // o2
    hw = (params["head_w"].reshape(n_out, o2, n_pos)
          .transpose(2, 1, 0).reshape(n_pos * o2, n_out))
    return {
        "w1": w1, "t1": t1.reshape(1, -1),
        "w2": w2, "t2": t2.reshape(1, -1),
        "hw": hw, "hb": params["head_b"].reshape(1, -1),
    }


# ------------------------------------------------------------------ forward

@jax.jit
def dqn_forward(folded, x, hidden_in=None):
    n, c, h, w = x.shape
    oh1, ow1 = conv2d_size_out(h, KS1, ST1), conv2d_size_out(w, KS1, ST1)
    oh2, ow2 = conv2d_size_out(oh1, KS2, ST2), conv2d_size_out(ow1, KS2, ST2)
    c1 = folded["w1"].shape[1]
    c2 = folded["w2"].shape[1]
    n_out = folded["hw"].shape[1]

    # conv1 im2col as a single XLA op; feature order is (C, KH, KW), matching the
    # OIHW weight flatten.  Rows ordered (w, b, h) so the kernel can do one big
    # matmul and scatter the result into the channels-last scratch with plain
    # contiguous slices (no in-kernel reshape/transpose).
    p1 = jax.lax.conv_general_dilated_patches(
        x, filter_shape=(KS1, KS1), window_strides=(ST1, ST1), padding="VALID",
        dimension_numbers=("NCHW", "OIHW", "NHWC"))      # (N, OH1, OW1, C*KS1*KS1)
    p1 = p1.transpose(2, 0, 1, 3).reshape(ow1 * n * oh1, c * KS1 * KS1)

    kernel = functools.partial(
        _dqn_fused_kernel, n=n, c1=c1, c2=c2, oh1=oh1, ow1=ow1, oh2=oh2, ow2=ow2,
        n_out=n_out)

    q = pl.pallas_call(
        kernel,
        out_shape=jax.ShapeDtypeStruct((n, n_out), jnp.float32),
        scratch_shapes=[
            pltpu.VMEM((n * oh1, ow1 * c1), jnp.float32),          # conv1 act
            pltpu.VMEM((n * oh2 * ow2, KS2 * KS2 * c1), jnp.float32),  # conv2 patches
        ],
    )(p1, folded["w1"], folded["t1"], folded["w2"], folded["t2"],
      folded["hw"], folded["hb"])
    return q, None


# ------------------------------------------------------------------ init & reference

def init_params(key, h, w, c, outputs):
    k1, k2, k3 = jax.random.split(key, 3)
    std = 0.004  # normal_init(0.0, 0.004); biases filled with 0
    convw = conv2d_size_out(conv2d_size_out(w, KS1, ST1), KS2, ST2)
    convh = conv2d_size_out(conv2d_size_out(h, KS1, ST1), KS2, ST2)
    lin_in = convw * convh * 64
    return {
        "conv1_w": std * jax.random.normal(k1, (32, c, KS1, KS1), jnp.float32),
        "conv1_b": jnp.zeros((32,), jnp.float32),
        "conv2_w": std * jax.random.normal(k2, (64, 32, KS2, KS2), jnp.float32),
        "conv2_b": jnp.zeros((64,), jnp.float32),
        "head_w": std * jax.random.normal(k3, (outputs, lin_in), jnp.float32),
        "head_b": jnp.zeros((outputs,), jnp.float32),
        "bn1": dict(gamma=jnp.ones(32, jnp.float32), beta=jnp.zeros(32, jnp.float32),
                    mean=jnp.zeros(32, jnp.float32), var=jnp.ones(32, jnp.float32)),
        "bn2": dict(gamma=jnp.ones(64, jnp.float32), beta=jnp.zeros(64, jnp.float32),
                    mean=jnp.zeros(64, jnp.float32), var=jnp.ones(64, jnp.float32)),
    }


def dqn_forward_ref(params, x, eps=1e-5):
    hp = jax.lax.Precision.HIGHEST

    def conv(x, w, b, stride):
        y = jax.lax.conv_general_dilated(
            x, w, window_strides=(stride, stride), padding="VALID",
            dimension_numbers=("NCHW", "OIHW", "NCHW"), precision=hp)
        return y + b.reshape(1, -1, 1, 1)

    def bn(x, p):
        return ((x - p["mean"].reshape(1, -1, 1, 1))
                / jnp.sqrt(p["var"].reshape(1, -1, 1, 1) + eps)
                * p["gamma"].reshape(1, -1, 1, 1) + p["beta"].reshape(1, -1, 1, 1))

    y = jax.nn.relu(bn(conv(x, params["conv1_w"], params["conv1_b"], ST1), params["bn1"]))
    y = jax.nn.relu(bn(conv(y, params["conv2_w"], params["conv2_b"], ST2), params["bn2"]))
    flat = y.reshape(x.shape[0], -1)
    out = jnp.dot(flat, params["head_w"].T, precision=hp) + params["head_b"]
    return out, None


# ------------------------------------------------------------------ main

if __name__ == "__main__":
    batch, c, h, w, outputs = 2, 4, 36, 36, 6   # conv stack: 36 -> 8 -> 3
    key = jax.random.PRNGKey(0)
    kx, kp = jax.random.split(key)

    x = jax.random.normal(kx, (batch, c, h, w), jnp.float32)
    params = init_params(kp, h, w, c, outputs)
    folded = fold_params(params)

    q_values, hidden = dqn_forward(folded, x)
    q_values = jax.block_until_ready(q_values)

    q_ref, _ = dqn_forward_ref(params, x)
    assert q_values.shape == (batch, outputs)
    assert hidden is None
    err = jnp.max(jnp.abs(q_values - q_ref))
    assert jnp.allclose(q_values, q_ref, atol=2e-6, rtol=1e-3), f"max abs err {err}"

    print("KERNEL_OK")
</pallas_src>

<mosaic_0001>
module attributes {stable_mosaic.version = 11 : i64} {
  func.func @_dqn_fused_kernel(%arg0: memref<128x256xf32, #tpu.memory_space<vmem>>, %arg1: memref<256x32xf32, #tpu.memory_space<vmem>>, %arg2: memref<1x32xf32, #tpu.memory_space<vmem>>, %arg3: memref<512x64xf32, #tpu.memory_space<vmem>>, %arg4: memref<1x64xf32, #tpu.memory_space<vmem>>, %arg5: memref<576x6xf32, #tpu.memory_space<vmem>>, %arg6: memref<1x6xf32, #tpu.memory_space<vmem>>, %arg7: memref<2x6xf32, #tpu.memory_space<vmem>>, %arg8: memref<16x256xf32, #tpu.memory_space<vmem>>, %arg9: memref<18x512xf32, #tpu.memory_space<vmem>>) attributes {dimension_semantics = [], scalar_prefetch = 0 : i64, scratch_operands = 2 : i64, tpu.core_type = #tpu.core_type<tc>} {
    %c0 = arith.constant 0 : index
    %c0_0 = arith.constant 0 : index
    %0 = vector.load %arg0[%c0, %c0_0] : memref<128x256xf32, #tpu.memory_space<vmem>>, vector<128x256xf32>
    %c0_1 = arith.constant 0 : index
    %c0_2 = arith.constant 0 : index
    %1 = vector.load %arg1[%c0_1, %c0_2] : memref<256x32xf32, #tpu.memory_space<vmem>>, vector<256x32xf32>
    %cst = arith.constant dense<0.000000e+00> : vector<128x32xf32>
    %2 = tpu.matmul %0, %1, %cst {dimension_numbers = #tpu.dot_dimension_numbers<[1], [0], [0], [1], [0, 0, 1, 1], [], []>} : vector<128x256xf32>, vector<256x32xf32>, vector<128x32xf32> -> vector<128x32xf32>
    %c0_3 = arith.constant 0 : index
    %c0_4 = arith.constant 0 : index
    %3 = vector.load %arg2[%c0_3, %c0_4] : memref<1x32xf32, #tpu.memory_space<vmem>>, vector<1x32xf32>
    %4 = vector.broadcast %3 : vector<1x32xf32> to vector<128x32xf32>
    %5 = arith.addf %2, %4 : vector<128x32xf32>
    %cst_5 = arith.constant 0.000000e+00 : f32
    %6 = vector.broadcast %cst_5 : f32 to vector<128x32xf32>
    %7 = arith.maximumf %5, %6 : vector<128x32xf32>
    %8 = vector.extract_strided_slice %7 {offsets = [0, 0], sizes = [16, 32], strides = [1, 1]} : vector<128x32xf32> to vector<16x32xf32>
    %c0_6 = arith.constant 0 : index
    %c0_7 = arith.constant 0 : index
    %9 = vector.load %arg8[%c0_6, %c0_7] : memref<16x256xf32, #tpu.memory_space<vmem>>, vector<16x32xf32>
    tpu.vector_store %arg8[%c0_6, %c0_7], %8 {strides = array<i32>} : memref<16x256xf32, #tpu.memory_space<vmem>>, vector<16x32xf32>,
    %10 = vector.extract_strided_slice %7 {offsets = [16, 0], sizes = [16, 32], strides = [1, 1]} : vector<128x32xf32> to vector<16x32xf32>
    %c0_8 = arith.constant 0 : index
    %c32 = arith.constant 32 : index
    %11 = vector.load %arg8[%c0_8, %c32] : memref<16x256xf32, #tpu.memory_space<vmem>>, vector<16x32xf32>
    tpu.vector_store %arg8[%c0_8, %c32], %10 {strides = array<i32>} : memref<16x256xf32, #tpu.memory_space<vmem>>, vector<16x32xf32>,
    %12 = vector.extract_strided_slice %7 {offsets = [32, 0], sizes = [16, 32], strides = [1, 1]} : vector<128x32xf32> to vector<16x32xf32>
    %c0_9 = arith.constant 0 : index
    %c64 = arith.constant 64 : index
    %13 = vector.load %arg8[%c0_9, %c64] : memref<16x256xf32, #tpu.memory_space<vmem>>, vector<16x32xf32>
    tpu.vector_store %arg8[%c0_9, %c64], %12 {strides = array<i32>} : memref<16x256xf32, #tpu.memory_space<vmem>>, vector<16x32xf32>,
    %14 = vector.extract_strided_slice %7 {offsets = [48, 0], sizes = [16, 32], strides = [1, 1]} : vector<128x32xf32> to vector<16x32xf32>
    %c0_10 = arith.constant 0 : index
    %c96 = arith.constant 96 : index
    %15 = vector.load %arg8[%c0_10, %c96] : memref<16x256xf32, #tpu.memory_space<vmem>>, vector<16x32xf32>
    tpu.vector_store %arg8[%c0_10, %c96], %14 {strides = array<i32>} : memref<16x256xf32, #tpu.memory_space<vmem>>, vector<16x32xf32>,
    %16 = vector.extract_strided_slice %7 {offsets = [64, 0], sizes = [16, 32], strides = [1, 1]} : vector<128x32xf32> to vector<16x32xf32>
    %c0_11 = arith.constant 0 : index
    %c128 = arith.constant 128 : index
    %17 = vector.load %arg8[%c0_11, %c128] : memref<16x256xf32, #tpu.memory_space<vmem>>, vector<16x32xf32>
    tpu.vector_store %arg8[%c0_11, %c128], %16 {strides = array<i32>} : memref<16x256xf32, #tpu.memory_space<vmem>>, vector<16x32xf32>,
    %18 = vector.extract_strided_slice %7 {offsets = [80, 0], sizes = [16, 32], strides = [1, 1]} : vector<128x32xf32> to vector<16x32xf32>
    %c0_12 = arith.constant 0 : index
    %c160 = arith.constant 160 : index
    %19 = vector.load %arg8[%c0_12, %c160] : memref<16x256xf32, #tpu.memory_space<vmem>>, vector<16x32xf32>
    tpu.vector_store %arg8[%c0_12, %c160], %18 {strides = array<i32>} : memref<16x256xf32, #tpu.memory_space<vmem>>, vector<16x32xf32>,
    %20 = vector.extract_strided_slice %7 {offsets = [96, 0], sizes = [16, 32], strides = [1, 1]} : vector<128x32xf32> to vector<16x32xf32>
    %c0_13 = arith.constant 0 : index
    %c192 = arith.constant 192 : index
    %21 = vector.load %arg8[%c0_13, %c192] : memref<16x256xf32, #tpu.memory_space<vmem>>, vector<16x32xf32>
    tpu.vector_store %arg8[%c0_13, %c192], %20 {strides = array<i32>} : memref<16x256xf32, #tpu.memory_space<vmem>>, vector<16x32xf32>,
    %22 = vector.extract_strided_slice %7 {offsets = [112, 0], sizes = [16, 32], strides = [1, 1]} : vector<128x32xf32> to vector<16x32xf32>
    %c0_14 = arith.constant 0 : index
    %c224 = arith.constant 224 : index
    %23 = vector.load %arg8[%c0_14, %c224] : memref<16x256xf32, #tpu.memory_space<vmem>>, vector<16x32xf32>
    tpu.vector_store %arg8[%c0_14, %c224], %22 {strides = array<i32>} : memref<16x256xf32, #tpu.memory_space<vmem>>, vector<16x32xf32>,
    %c0_15 = arith.constant 0 : index
    %c0_16 = arith.constant 0 : index
    %24 = vector.load %arg8[%c0_15, %c0_16] : memref<16x256xf32, #tpu.memory_space<vmem>>, vector<1x128xf32>
    %c0_17 = arith.constant 0 : index
    %c0_18 = arith.constant 0 : index
    %25 = vector.load %arg9[%c0_17, %c0_18] : memref<18x512xf32, #tpu.memory_space<vmem>>, vector<1x128xf32>
    tpu.vector_store %arg9[%c0_17, %c0_18], %24 {strides = array<i32>} : memref<18x512xf32, #tpu.memory_space<vmem>>, vector<1x128xf32>,
    %c1 = arith.constant 1 : index
    %c0_19 = arith.constant 0 : index
    %26 = vector.load %arg8[%c1, %c0_19] : memref<16x256xf32, #tpu.memory_space<vmem>>, vector<1x128xf32>
    %c0_20 = arith.constant 0 : index
    %c128_21 = arith.constant 128 : index
    %27 = vector.load %arg9[%c0_20, %c128_21] : memref<18x512xf32, #tpu.memory_space<vmem>>, vector<1x128xf32>
    tpu.vector_store %arg9[%c0_20, %c128_21], %26 {strides = array<i32>} : memref<18x512xf32, #tpu.memory_space<vmem>>, vector<1x128xf32>,
    %c2 = arith.constant 2 : index
    %c0_22 = arith.constant 0 : index
    %28 = vector.load %arg8[%c2, %c0_22] : memref<16x256xf32, #tpu.memory_space<vmem>>, vector<1x128xf32>
    %c0_23 = arith.constant 0 : index
    %c256 = arith.constant 256 : index
    %29 = vector.load %arg9[%c0_23, %c256] : memref<18x512xf32, #tpu.memory_space<vmem>>, vector<1x128xf32>
    tpu.vector_store %arg9[%c0_23, %c256], %28 {strides = array<i32>} : memref<18x512xf32, #tpu.memory_space<vmem>>, vector<1x128xf32>,
    %c3 = arith.constant 3 : index
    %c0_24 = arith.constant 0 : index
    %30 = vector.load %arg8[%c3, %c0_24] : memref<16x256xf32, #tpu.memory_space<vmem>>, vector<1x128xf32>
    %c0_25 = arith.constant 0 : index
    %c384 = arith.constant 384 : index
    %31 = vector.load %arg9[%c0_25, %c384] : memref<18x512xf32, #tpu.memory_space<vmem>>, vector<1x128xf32>
    tpu.vector_store %arg9[%c0_25, %c384], %30 {strides = array<i32>} : memref<18x512xf32, #tpu.memory_space<vmem>>, vector<1x128xf32>,
    %c8 = arith.constant 8 : index
    %c0_26 = arith.constant 0 : index
    %32 = vector.load %arg8[%c8, %c0_26] : memref<16x256xf32, #tpu.memory_space<vmem>>, vector<1x128xf32>
    %c1_27 = arith.constant 1 : index
    %c0_28 = arith.constant 0 : index
    %33 = vector.load %arg9[%c1_27, %c0_28] : memref<18x512xf32, #tpu.memory_space<vmem>>, vector<1x128xf32>
    tpu.vector_store %arg9[%c1_27, %c0_28], %32 {strides = array<i32>} : memref<18x512xf32, #tpu.memory_space<vmem>>, vector<1x128xf32>,
    %c9 = arith.constant 9 : index
    %c0_29 = arith.constant 0 : index
    %34 = vector.load %arg8[%c9, %c0_29] : memref<16x256xf32, #tpu.memory_space<vmem>>, vector<1x128xf32>
    %c1_30 = arith.constant 1 : index
    %c128_31 = arith.constant 128 : index
    %35 = vector.load %arg9[%c1_30, %c128_31] : memref<18x512xf32, #tpu.memory_space<vmem>>, vector<1x128xf32>
    tpu.vector_store %arg9[%c1_30, %c128_31], %34 {strides = array<i32>} : memref<18x512xf32, #tpu.memory_space<vmem>>, vector<1x128xf32>,
    %c10 = arith.constant 10 : index
    %c0_32 = arith.constant 0 : index
    %36 = vector.load %arg8[%c10, %c0_32] : memref<16x256xf32, #tpu.memory_space<vmem>>, vector<1x128xf32>
    %c1_33 = arith.constant 1 : index
    %c256_34 = arith.constant 256 : index
    %37 = vector.load %arg9[%c1_33, %c256_34] : memref<18x512xf32, #tpu.memory_space<vmem>>, vector<1x128xf32>
    tpu.vector_store %arg9[%c1_33, %c256_34], %36 {strides = array<i32>} : memref<18x512xf32, #tpu.memory_space<vmem>>, vector<1x128xf32>,
    %c11 = arith.constant 11 : index
    %c0_35 = arith.constant 0 : index
    %38 = vector.load %arg8[%c11, %c0_35] : memref<16x256xf32, #tpu.memory_space<vmem>>, vector<1x128xf32>
    %c1_36 = arith.constant 1 : index
    %c384_37 = arith.constant 384 : index
    %39 = vector.load %arg9[%c1_36, %c384_37] : memref<18x512xf32, #tpu.memory_space<vmem>>, vector<1x128xf32>
    tpu.vector_store %arg9[%c1_36, %c384_37], %38 {strides = array<i32>} : memref<18x512xf32, #tpu.memory_space<vmem>>, vector<1x128xf32>,
    %c0_38 = arith.constant 0 : index
    %c64_39 = arith.constant 64 : index
    %40 = vector.load %arg8[%c0_38, %c64_39] : memref<16x256xf32, #tpu.memory_space<vmem>>, vector<1x128xf32>
    %c2_40 = arith.constant 2 : index
    %c0_41 = arith.constant 0 : index
    %41 = vector.load %arg9[%c2_40, %c0_41] : memref<18x512xf32, #tpu.memory_space<vmem>>, vector<1x128xf32>
    tpu.vector_store %arg9[%c2_40, %c0_41], %40 {strides = array<i32>} : memref<18x512xf32, #tpu.memory_space<vmem>>, vector<1x128xf32>,
    %c1_42 = arith.constant 1 : index
    %c64_43 = arith.constant 64 : index
    %42 = vector.load %arg8[%c1_42, %c64_43] : memref<16x256xf32, #tpu.memory_space<vmem>>, vector<1x128xf32>
    %c2_44 = arith.constant 2 : index
    %c128_45 = arith.constant 128 : index
    %43 = vector.load %arg9[%c2_44, %c128_45] : memref<18x512xf32, #tpu.memory_space<vmem>>, vector<1x128xf32>
    tpu.vector_store %arg9[%c2_44, %c128_45], %42 {strides = array<i32>} : memref<18x512xf32, #tpu.memory_space<vmem>>, vector<1x128xf32>,
    %c2_46 = arith.constant 2 : index
    %c64_47 = arith.constant 64 : index
    %44 = vector.load %arg8[%c2_46, %c64_47] : memref<16x256xf32, #tpu.memory_space<vmem>>, vector<1x128xf32>
    %c2_48 = arith.constant 2 : index
    %c256_49 = arith.constant 256 : index
    %45 = vector.load %arg9[%c2_48, %c256_49] : memref<18x512xf32, #tpu.memory_space<vmem>>, vector<1x128xf32>
    tpu.vector_store %arg9[%c2_48, %c256_49], %44 {strides = array<i32>} : memref<18x512xf32, #tpu.memory_space<vmem>>, vector<1x128xf32>,
    %c3_50 = arith.constant 3 : index
    %c64_51 = arith.constant 64 : index
    %46 = vector.load %arg8[%c3_50, %c64_51] : memref<16x256xf32, #tpu.memory_space<vmem>>, vector<1x128xf32>
    %c2_52 = arith.constant 2 : index
    %c384_53 = arith.constant 384 : index
    %47 = vector.load %arg9[%c2_52, %c384_53] : memref<18x512xf32, #tpu.memory_space<vmem>>, vector<1x128xf32>
    tpu.vector_store %arg9[%c2_52, %c384_53], %46 {strides = array<i32>} : memref<18x512xf32, #tpu.memory_space<vmem>>, vector<1x128xf32>,
    %c8_54 = arith.constant 8 : index
    %c64_55 = arith.constant 64 : index
    %48 = vector.load %arg8[%c8_54, %c64_55] : memref<16x256xf32, #tpu.memory_space<vmem>>, vector<1x128xf32>
    %c3_56 = arith.constant 3 : index
    %c0_57 = arith.constant 0 : index
    %49 = vector.load %arg9[%c3_56, %c0_57] : memref<18x512xf32, #tpu.memory_space<vmem>>, vector<1x128xf32>
    tpu.vector_store %arg9[%c3_56, %c0_57], %48 {strides = array<i32>} : memref<18x512xf32, #tpu.memory_space<vmem>>, vector<1x128xf32>,
    %c9_58 = arith.constant 9 : index
    %c64_59 = arith.constant 64 : index
    %50 = vector.load %arg8[%c9_58, %c64_59] : memref<16x256xf32, #tpu.memory_space<vmem>>, vector<1x128xf32>
    %c3_60 = arith.constant 3 : index
    %c128_61 = arith.constant 128 : index
    %51 = vector.load %arg9[%c3_60, %c128_61] : memref<18x512xf32, #tpu.memory_space<vmem>>, vector<1x128xf32>
    tpu.vector_store %arg9[%c3_60, %c128_61], %50 {strides = array<i32>} : memref<18x512xf32, #tpu.memory_space<vmem>>, vector<1x128xf32>,
    %c10_62 = arith.constant 10 : index
    %c64_63 = arith.constant 64 : index
    %52 = vector.load %arg8[%c10_62, %c64_63] : memref<16x256xf32, #tpu.memory_space<vmem>>, vector<1x128xf32>
    %c3_64 = arith.constant 3 : index
    %c256_65 = arith.constant 256 : index
    %53 = vector.load %arg9[%c3_64, %c256_65] : memref<18x512xf32, #tpu.memory_space<vmem>>, vector<1x128xf32>
    tpu.vector_store %arg9[%c3_64, %c256_65], %52 {strides = array<i32>} : memref<18x512xf32, #tpu.memory_space<vmem>>, vector<1x128xf32>,
    %c11_66 = arith.constant 11 : index
    %c64_67 = arith.constant 64 : index
    %54 = vector.load %arg8[%c11_66, %c64_67] : memref<16x256xf32, #tpu.memory_space<vmem>>, vector<1x128xf32>
    %c3_68 = arith.constant 3 : index
    %c384_69 = arith.constant 384 : index
    %55 = vector.load %arg9[%c3_68, %c384_69] : memref<18x512xf32, #tpu.memory_space<vmem>>, vector<1x128xf32>
    tpu.vector_store %arg9[%c3_68, %c384_69], %54 {strides = array<i32>} : memref<18x512xf32, #tpu.memory_space<vmem>>, vector<1x128xf32>,
    %c0_70 = arith.constant 0 : index
    %c128_71 = arith.constant 128 : index
    %56 = vector.load %arg8[%c0_70, %c128_71] : memref<16x256xf32, #tpu.memory_space<vmem>>, vector<1x128xf32>
    %c4 = arith.constant 4 : index
    %c0_72 = arith.constant 0 : index
    %57 = vector.load %arg9[%c4, %c0_72] : memref<18x512xf32, #tpu.memory_space<vmem>>, vector<1x128xf32>
    tpu.vector_store %arg9[%c4, %c0_72], %56 {strides = array<i32>} : memref<18x512xf32, #tpu.memory_space<vmem>>, vector<1x128xf32>,
    %c1_73 = arith.constant 1 : index
    %c128_74 = arith.constant 128 : index
    %58 = vector.load %arg8[%c1_73, %c128_74] : memref<16x256xf32, #tpu.memory_space<vmem>>, vector<1x128xf32>
    %c4_75 = arith.constant 4 : index
    %c128_76 = arith.constant 128 : index
    %59 = vector.load %arg9[%c4_75, %c128_76] : memref<18x512xf32, #tpu.memory_space<vmem>>, vector<1x128xf32>
    tpu.vector_store %arg9[%c4_75, %c128_76], %58 {strides = array<i32>} : memref<18x512xf32, #tpu.memory_space<vmem>>, vector<1x128xf32>,
    %c2_77 = arith.constant 2 : index
    %c128_78 = arith.constant 128 : index
    %60 = vector.load %arg8[%c2_77, %c128_78] : memref<16x256xf32, #tpu.memory_space<vmem>>, vector<1x128xf32>
    %c4_79 = arith.constant 4 : index
    %c256_80 = arith.constant 256 : index
    %61 = vector.load %arg9[%c4_79, %c256_80] : memref<18x512xf32, #tpu.memory_space<vmem>>, vector<1x128xf32>
    tpu.vector_store %arg9[%c4_79, %c256_80], %60 {strides = array<i32>} : memref<18x512xf32, #tpu.memory_space<vmem>>, vector<1x128xf32>,
    %c3_81 = arith.constant 3 : index
    %c128_82 = arith.constant 128 : index
    %62 = vector.load %arg8[%c3_81, %c128_82] : memref<16x256xf32, #tpu.memory_space<vmem>>, vector<1x128xf32>
    %c4_83 = arith.constant 4 : index
    %c384_84 = arith.constant 384 : index
    %63 = vector.load %arg9[%c4_83, %c384_84] : memref<18x512xf32, #tpu.memory_space<vmem>>, vector<1x128xf32>
    tpu.vector_store %arg9[%c4_83, %c384_84], %62 {strides = array<i32>} : memref<18x512xf32, #tpu.memory_space<vmem>>, vector<1x128xf32>,
    %c8_85 = arith.constant 8 : index
    %c128_86 = arith.constant 128 : index
    %64 = vector.load %arg8[%c8_85, %c128_86] : memref<16x256xf32, #tpu.memory_space<vmem>>, vector<1x128xf32>
    %c5 = arith.constant 5 : index
    %c0_87 = arith.constant 0 : index
    %65 = vector.load %arg9[%c5, %c0_87] : memref<18x512xf32, #tpu.memory_space<vmem>>, vector<1x128xf32>
    tpu.vector_store %arg9[%c5, %c0_87], %64 {strides = array<i32>} : memref<18x512xf32, #tpu.memory_space<vmem>>, vector<1x128xf32>,
    %c9_88 = arith.constant 9 : index
    %c128_89 = arith.constant 128 : index
    %66 = vector.load %arg8[%c9_88, %c128_89] : memref<16x256xf32, #tpu.memory_space<vmem>>, vector<1x128xf32>
    %c5_90 = arith.constant 5 : index
    %c128_91 = arith.constant 128 : index
    %67 = vector.load %arg9[%c5_90, %c128_91] : memref<18x512xf32, #tpu.memory_space<vmem>>, vector<1x128xf32>
    tpu.vector_store %arg9[%c5_90, %c128_91], %66 {strides = array<i32>} : memref<18x512xf32, #tpu.memory_space<vmem>>, vector<1x128xf32>,
    %c10_92 = arith.constant 10 : index
    %c128_93 = arith.constant 128 : index
    %68 = vector.load %arg8[%c10_92, %c128_93] : memref<16x256xf32, #tpu.memory_space<vmem>>, vector<1x128xf32>
    %c5_94 = arith.constant 5 : index
    %c256_95 = arith.constant 256 : index
    %69 = vector.load %arg9[%c5_94, %c256_95] : memref<18x512xf32, #tpu.memory_space<vmem>>, vector<1x128xf32>
    tpu.vector_store %arg9[%c5_94, %c256_95], %68 {strides = array<i32>} : memref<18x512xf32, #tpu.memory_space<vmem>>, vector<1x128xf32>,
    %c11_96 = arith.constant 11 : index
    %c128_97 = arith.constant 128 : index
    %70 = vector.load %arg8[%c11_96, %c128_97] : memref<16x256xf32, #tpu.memory_space<vmem>>, vector<1x128xf32>
    %c5_98 = arith.constant 5 : index
    %c384_99 = arith.constant 384 : index
    %71 = vector.load %arg9[%c5_98, %c384_99] : memref<18x512xf32, #tpu.memory_space<vmem>>, vector<1x128xf32>
    tpu.vector_store %arg9[%c5_98, %c384_99], %70 {strides = array<i32>} : memref<18x512xf32, #tpu.memory_space<vmem>>, vector<1x128xf32>,
    %c2_100 = arith.constant 2 : index
    %c0_101 = arith.constant 0 : index
    %72 = vector.load %arg8[%c2_100, %c0_101] : memref<16x256xf32, #tpu.memory_space<vmem>>, vector<1x128xf32>
    %c6 = arith.constant 6 : index
    %c0_102 = arith.constant 0 : index
    %73 = vector.load %arg9[%c6, %c0_102] : memref<18x512xf32, #tpu.memory_space<vmem>>, vector<1x128xf32>
    tpu.vector_store %arg9[%c6, %c0_102], %72 {strides = array<i32>} : memref<18x512xf32, #tpu.memory_space<vmem>>, vector<1x128xf32>,
    %c3_103 = arith.constant 3 : index
    %c0_104 = arith.constant 0 : index
    %74 = vector.load %arg8[%c3_103, %c0_104] : memref<16x256xf32, #tpu.memory_space<vmem>>, vector<1x128xf32>
    %c6_105 = arith.constant 6 : index
    %c128_106 = arith.constant 128 : index
    %75 = vector.load %arg9[%c6_105, %c128_106] : memref<18x512xf32, #tpu.memory_space<vmem>>, vector<1x128xf32>
    tpu.vector_store %arg9[%c6_105, %c128_106], %74 {strides = array<i32>} : memref<18x512xf32, #tpu.memory_space<vmem>>, vector<1x128xf32>,
    %c4_107 = arith.constant 4 : index
    %c0_108 = arith.constant 0 : index
    %76 = vector.load %arg8[%c4_107, %c0_108] : memref<16x256xf32, #tpu.memory_space<vmem>>, vector<1x128xf32>
    %c6_109 = arith.constant 6 : index
    %c256_110 = arith.constant 256 : index
    %77 = vector.load %arg9[%c6_109, %c256_110] : memref<18x512xf32, #tpu.memory_space<vmem>>, vector<1x128xf32>
    tpu.vector_store %arg9[%c6_109, %c256_110], %76 {strides = array<i32>} : memref<18x512xf32, #tpu.memory_space<vmem>>, vector<1x128xf32>,
    %c5_111 = arith.constant 5 : index
    %c0_112 = arith.constant 0 : index
    %78 = vector.load %arg8[%c5_111, %c0_112] : memref<16x256xf32, #tpu.memory_space<vmem>>, vector<1x128xf32>
    %c6_113 = arith.constant 6 : index
    %c384_114 = arith.constant 384 : index
    %79 = vector.load %arg9[%c6_113, %c384_114] : memref<18x512xf32, #tpu.memory_space<vmem>>, vector<1x128xf32>
    tpu.vector_store %arg9[%c6_113, %c384_114], %78 {strides = array<i32>} : memref<18x512xf32, #tpu.memory_space<vmem>>, vector<1x128xf32>,
    %c10_115 = arith.constant 10 : index
    %c0_116 = arith.constant 0 : index
    %80 = vector.load %arg8[%c10_115, %c0_116] : memref<16x256xf32, #tpu.memory_space<vmem>>, vector<1x128xf32>
    %c7 = arith.constant 7 : index
    %c0_117 = arith.constant 0 : index
    %81 = vector.load %arg9[%c7, %c0_117] : memref<18x512xf32, #tpu.memory_space<vmem>>, vector<1x128xf32>
    tpu.vector_store %arg9[%c7, %c0_117], %80 {strides = array<i32>} : memref<18x512xf32, #tpu.memory_space<vmem>>, vector<1x128xf32>,
    %c11_118 = arith.constant 11 : index
    %c0_119 = arith.constant 0 : index
    %82 = vector.load %arg8[%c11_118, %c0_119] : memref<16x256xf32, #tpu.memory_space<vmem>>, vector<1x128xf32>
    %c7_120 = arith.constant 7 : index
    %c128_121 = arith.constant 128 : index
    %83 = vector.load %arg9[%c7_120, %c128_121] : memref<18x512xf32, #tpu.memory_space<vmem>>, vector<1x128xf32>
    tpu.vector_store %arg9[%c7_120, %c128_121], %82 {strides = array<i32>} : memref<18x512xf32, #tpu.memory_space<vmem>>, vector<1x128xf32>,
    %c12 = arith.constant 12 : index
    %c0_122 = arith.constant 0 : index
    %84 = vector.load %arg8[%c12, %c0_122] : memref<16x256xf32, #tpu.memory_space<vmem>>, vector<1x128xf32>
    %c7_123 = arith.constant 7 : index
    %c256_124 = arith.constant 256 : index
    %85 = vector.load %arg9[%c7_123, %c256_124] : memref<18x512xf32, #tpu.memory_space<vmem>>, vector<1x128xf32>
    tpu.vector_store %arg9[%c7_123, %c256_124], %84 {strides = array<i32>} : memref<18x512xf32, #tpu.memory_space<vmem>>, vector<1x128xf32>,
    %c13 = arith.constant 13 : index
    %c0_125 = arith.constant 0 : index
    %86 = vector.load %arg8[%c13, %c0_125] : memref<16x256xf32, #tpu.memory_space<vmem>>, vector<1x128xf32>
    %c7_126 = arith.constant 7 : index
    %c384_127 = arith.constant 384 : index
    %87 = vector.load %arg9[%c7_126, %c384_127] : memref<18x512xf32, #tpu.memory_space<vmem>>, vector<1x128xf32>
    tpu.vector_store %arg9[%c7_126, %c384_127], %86 {strides = array<i32>} : memref<18x512xf32, #tpu.memory_space<vmem>>, vector<1x128xf32>,
    %c2_128 = arith.constant 2 : index
    %c64_129 = arith.constant 64 : index
    %88 = vector.load %arg8[%c2_128, %c64_129] : memref<16x256xf32, #tpu.memory_space<vmem>>, vector<1x128xf32>
    %c8_130 = arith.constant 8 : index
    %c0_131 = arith.constant 0 : index
    %89 = vector.load %arg9[%c8_130, %c0_131] : memref<18x512xf32, #tpu.memory_space<vmem>>, vector<1x128xf32>
    tpu.vector_store %arg9[%c8_130, %c0_131], %88 {strides = array<i32>} : memref<18x512xf32, #tpu.memory_space<vmem>>, vector<1x128xf32>,
    %c3_132 = arith.constant 3 : index
    %c64_133 = arith.constant 64 : index
    %90 = vector.load %arg8[%c3_132, %c64_133] : memref<16x256xf32, #tpu.memory_space<vmem>>, vector<1x128xf32>
    %c8_134 = arith.constant 8 : index
    %c128_135 = arith.constant 128 : index
    %91 = vector.load %arg9[%c8_134, %c128_135] : memref<18x512xf32, #tpu.memory_space<vmem>>, vector<1x128xf32>
    tpu.vector_store %arg9[%c8_134, %c128_135], %90 {strides = array<i32>} : memref<18x512xf32, #tpu.memory_space<vmem>>, vector<1x128xf32>,
    %c4_136 = arith.constant 4 : index
    %c64_137 = arith.constant 64 : index
    %92 = vector.load %arg8[%c4_136, %c64_137] : memref<16x256xf32, #tpu.memory_space<vmem>>, vector<1x128xf32>
    %c8_138 = arith.constant 8 : index
    %c256_139 = arith.constant 256 : index
    %93 = vector.load %arg9[%c8_138, %c256_139] : memref<18x512xf32, #tpu.memory_space<vmem>>, vector<1x128xf32>
    tpu.vector_store %arg9[%c8_138, %c256_139], %92 {strides = array<i32>} : memref<18x512xf32, #tpu.memory_space<vmem>>, vector<1x128xf32>,
    %c5_140 = arith.constant 5 : index
    %c64_141 = arith.constant 64 : index
    %94 = vector.load %arg8[%c5_140, %c64_141] : memref<16x256xf32, #tpu.memory_space<vmem>>, vector<1x128xf32>
    %c8_142 = arith.constant 8 : index
    %c384_143 = arith.constant 384 : index
    %95 = vector.load %arg9[%c8_142, %c384_143] : memref<18x512xf32, #tpu.memory_space<vmem>>, vector<1x128xf32>
    tpu.vector_store %arg9[%c8_142, %c384_143], %94 {strides = array<i32>} : memref<18x512xf32, #tpu.memory_space<vmem>>, vector<1x128xf32>,
    %c10_144 = arith.constant 10 : index
    %c64_145 = arith.constant 64 : index
    %96 = vector.load %arg8[%c10_144, %c64_145] : memref<16x256xf32, #tpu.memory_space<vmem>>, vector<1x128xf32>
    %c9_146 = arith.constant 9 : index
    %c0_147 = arith.constant 0 : index
    %97 = vector.load %arg9[%c9_146, %c0_147] : memref<18x512xf32, #tpu.memory_space<vmem>>, vector<1x128xf32>
    tpu.vector_store %arg9[%c9_146, %c0_147], %96 {strides = array<i32>} : memref<18x512xf32, #tpu.memory_space<vmem>>, vector<1x128xf32>,
    %c11_148 = arith.constant 11 : index
    %c64_149 = arith.constant 64 : index
    %98 = vector.load %arg8[%c11_148, %c64_149] : memref<16x256xf32, #tpu.memory_space<vmem>>, vector<1x128xf32>
    %c9_150 = arith.constant 9 : index
    %c128_151 = arith.constant 128 : index
    %99 = vector.load %arg9[%c9_150, %c128_151] : memref<18x512xf32, #tpu.memory_space<vmem>>, vector<1x128xf32>
    tpu.vector_store %arg9[%c9_150, %c128_151], %98 {strides = array<i32>} : memref<18x512xf32, #tpu.memory_space<vmem>>, vector<1x128xf32>,
    %c12_152 = arith.constant 12 : index
    %c64_153 = arith.constant 64 : index
    %100 = vector.load %arg8[%c12_152, %c64_153] : memref<16x256xf32, #tpu.memory_space<vmem>>, vector<1x128xf32>
    %c9_154 = arith.constant 9 : index
    %c256_155 = arith.constant 256 : index
    %101 = vector.load %arg9[%c9_154, %c256_155] : memref<18x512xf32, #tpu.memory_space<vmem>>, vector<1x128xf32>
    tpu.vector_store %arg9[%c9_154, %c256_155], %100 {strides = array<i32>} : memref<18x512xf32, #tpu.memory_space<vmem>>, vector<1x128xf32>,
    %c13_156 = arith.constant 13 : index
    %c64_157 = arith.constant 64 : index
    %102 = vector.load %arg8[%c13_156, %c64_157] : memref<16x256xf32, #tpu.memory_space<vmem>>, vector<1x128xf32>
    %c9_158 = arith.constant 9 : index
    %c384_159 = arith.constant 384 : index
    %103 = vector.load %arg9[%c9_158, %c384_159] : memref<18x512xf32, #tpu.memory_space<vmem>>, vector<1x128xf32>
    tpu.vector_store %arg9[%c9_158, %c384_159], %102 {strides = array<i32>} : memref<18x512xf32, #tpu.memory_space<vmem>>, vector<1x128xf32>,
    %c2_160 = arith.constant 2 : index
    %c128_161 = arith.constant 128 : index
    %104 = vector.load %arg8[%c2_160, %c128_161] : memref<16x256xf32, #tpu.memory_space<vmem>>, vector<1x128xf32>
    %c10_162 = arith.constant 10 : index
    %c0_163 = arith.constant 0 : index
    %105 = vector.load %arg9[%c10_162, %c0_163] : memref<18x512xf32, #tpu.memory_space<vmem>>, vector<1x128xf32>
    tpu.vector_store %arg9[%c10_162, %c0_163], %104 {strides = array<i32>} : memref<18x512xf32, #tpu.memory_space<vmem>>, vector<1x128xf32>,
    %c3_164 = arith.constant 3 : index
    %c128_165 = arith.constant 128 : index
    %106 = vector.load %arg8[%c3_164, %c128_165] : memref<16x256xf32, #tpu.memory_space<vmem>>, vector<1x128xf32>
    %c10_166 = arith.constant 10 : index
    %c128_167 = arith.constant 128 : index
    %107 = vector.load %arg9[%c10_166, %c128_167] : memref<18x512xf32, #tpu.memory_space<vmem>>, vector<1x128xf32>
    tpu.vector_store %arg9[%c10_166, %c128_167], %106 {strides = array<i32>} : memref<18x512xf32, #tpu.memory_space<vmem>>, vector<1x128xf32>,
    %c4_168 = arith.constant 4 : index
    %c128_169 = arith.constant 128 : index
    %108 = vector.load %arg8[%c4_168, %c128_169] : memref<16x256xf32, #tpu.memory_space<vmem>>, vector<1x128xf32>
    %c10_170 = arith.constant 10 : index
    %c256_171 = arith.constant 256 : index
    %109 = vector.load %arg9[%c10_170, %c256_171] : memref<18x512xf32, #tpu.memory_space<vmem>>, vector<1x128xf32>
    tpu.vector_store %arg9[%c10_170, %c256_171], %108 {strides = array<i32>} : memref<18x512xf32, #tpu.memory_space<vmem>>, vector<1x128xf32>,
    %c5_172 = arith.constant 5 : index
    %c128_173 = arith.constant 128 : index
    %110 = vector.load %arg8[%c5_172, %c128_173] : memref<16x256xf32, #tpu.memory_space<vmem>>, vector<1x128xf32>
    %c10_174 = arith.constant 10 : index
    %c384_175 = arith.constant 384 : index
    %111 = vector.load %arg9[%c10_174, %c384_175] : memref<18x512xf32, #tpu.memory_space<vmem>>, vector<1x128xf32>
    tpu.vector_store %arg9[%c10_174, %c384_175], %110 {strides = array<i32>} : memref<18x512xf32, #tpu.memory_space<vmem>>, vector<1x128xf32>,
    %c10_176 = arith.constant 10 : index
    %c128_177 = arith.constant 128 : index
    %112 = vector.load %arg8[%c10_176, %c128_177] : memref<16x256xf32, #tpu.memory_space<vmem>>, vector<1x128xf32>
    %c11_178 = arith.constant 11 : index
    %c0_179 = arith.constant 0 : index
    %113 = vector.load %arg9[%c11_178, %c0_179] : memref<18x512xf32, #tpu.memory_space<vmem>>, vector<1x128xf32>
    tpu.vector_store %arg9[%c11_178, %c0_179], %112 {strides = array<i32>} : memref<18x512xf32, #tpu.memory_space<vmem>>, vector<1x128xf32>,
    %c11_180 = arith.constant 11 : index
    %c128_181 = arith.constant 128 : index
    %114 = vector.load %arg8[%c11_180, %c128_181] : memref<16x256xf32, #tpu.memory_space<vmem>>, vector<1x128xf32>
    %c11_182 = arith.constant 11 : index
    %c128_183 = arith.constant 128 : index
    %115 = vector.load %arg9[%c11_182, %c128_183] : memref<18x512xf32, #tpu.memory_space<vmem>>, vector<1x128xf32>
    tpu.vector_store %arg9[%c11_182, %c128_183], %114 {strides = array<i32>} : memref<18x512xf32, #tpu.memory_space<vmem>>, vector<1x128xf32>,
    %c12_184 = arith.constant 12 : index
    %c128_185 = arith.constant 128 : index
    %116 = vector.load %arg8[%c12_184, %c128_185] : memref<16x256xf32, #tpu.memory_space<vmem>>, vector<1x128xf32>
    %c11_186 = arith.constant 11 : index
    %c256_187 = arith.constant 256 : index
    %117 = vector.load %arg9[%c11_186, %c256_187] : memref<18x512xf32, #tpu.memory_space<vmem>>, vector<1x128xf32>
    tpu.vector_store %arg9[%c11_186, %c256_187], %116 {strides = array<i32>} : memref<18x512xf32, #tpu.memory_space<vmem>>, vector<1x128xf32>,
    %c13_188 = arith.constant 13 : index
    %c128_189 = arith.constant 128 : index
    %118 = vector.load %arg8[%c13_188, %c128_189] : memref<16x256xf32, #tpu.memory_space<vmem>>, vector<1x128xf32>
    %c11_190 = arith.constant 11 : index
    %c384_191 = arith.constant 384 : index
    %119 = vector.load %arg9[%c11_190, %c384_191] : memref<18x512xf32, #tpu.memory_space<vmem>>, vector<1x128xf32>
    tpu.vector_store %arg9[%c11_190, %c384_191], %118 {strides = array<i32>} : memref<18x512xf32, #tpu.memory_space<vmem>>, vector<1x128xf32>,
    %c4_192 = arith.constant 4 : index
    %c0_193 = arith.constant 0 : index
    %120 = vector.load %arg8[%c4_192, %c0_193] : memref<16x256xf32, #tpu.memory_space<vmem>>, vector<1x128xf32>
    %c12_194 = arith.constant 12 : index
    %c0_195 = arith.constant 0 : index
    %121 = vector.load %arg9[%c12_194, %c0_195] : memref<18x512xf32, #tpu.memory_space<vmem>>, vector<1x128xf32>
    tpu.vector_store %arg9[%c12_194, %c0_195], %120 {strides = array<i32>} : memref<18x512xf32, #tpu.memory_space<vmem>>, vector<1x128xf32>,
    %c5_196 = arith.constant 5 : index
    %c0_197 = arith.constant 0 : index
    %122 = vector.load %arg8[%c5_196, %c0_197] : memref<16x256xf32, #tpu.memory_space<vmem>>, vector<1x128xf32>
    %c12_198 = arith.constant 12 : index
    %c128_199 = arith.constant 128 : index
    %123 = vector.load %arg9[%c12_198, %c128_199] : memref<18x512xf32, #tpu.memory_space<vmem>>, vector<1x128xf32>
    tpu.vector_store %arg9[%c12_198, %c128_199], %122 {strides = array<i32>} : memref<18x512xf32, #tpu.memory_space<vmem>>, vector<1x128xf32>,
    %c6_200 = arith.constant 6 : index
    %c0_201 = arith.constant 0 : index
    %124 = vector.load %arg8[%c6_200, %c0_201] : memref<16x256xf32, #tpu.memory_space<vmem>>, vector<1x128xf32>
    %c12_202 = arith.constant 12 : index
    %c256_203 = arith.constant 256 : index
    %125 = vector.load %arg9[%c12_202, %c256_203] : memref<18x512xf32, #tpu.memory_space<vmem>>, vector<1x128xf32>
    tpu.vector_store %arg9[%c12_202, %c256_203], %124 {strides = array<i32>} : memref<18x512xf32, #tpu.memory_space<vmem>>, vector<1x128xf32>,
    %c7_204 = arith.constant 7 : index
    %c0_205 = arith.constant 0 : index
    %126 = vector.load %arg8[%c7_204, %c0_205] : memref<16x256xf32, #tpu.memory_space<vmem>>, vector<1x128xf32>
    %c12_206 = arith.constant 12 : index
    %c384_207 = arith.constant 384 : index
    %127 = vector.load %arg9[%c12_206, %c384_207] : memref<18x512xf32, #tpu.memory_space<vmem>>, vector<1x128xf32>
    tpu.vector_store %arg9[%c12_206, %c384_207], %126 {strides = array<i32>} : memref<18x512xf32, #tpu.memory_space<vmem>>, vector<1x128xf32>,
    %c12_208 = arith.constant 12 : index
    %c0_209 = arith.constant 0 : index
    %128 = vector.load %arg8[%c12_208, %c0_209] : memref<16x256xf32, #tpu.memory_space<vmem>>, vector<1x128xf32>
    %c13_210 = arith.constant 13 : index
    %c0_211 = arith.constant 0 : index
    %129 = vector.load %arg9[%c13_210, %c0_211] : memref<18x512xf32, #tpu.memory_space<vmem>>, vector<1x128xf32>
    tpu.vector_store %arg9[%c13_210, %c0_211], %128 {strides = array<i32>} : memref<18x512xf32, #tpu.memory_space<vmem>>, vector<1x128xf32>,
    %c13_212 = arith.constant 13 : index
    %c0_213 = arith.constant 0 : index
    %130 = vector.load %arg8[%c13_212, %c0_213] : memref<16x256xf32, #tpu.memory_space<vmem>>, vector<1x128xf32>
    %c13_214 = arith.constant 13 : index
    %c128_215 = arith.constant 128 : index
    %131 = vector.load %arg9[%c13_214, %c128_215] : memref<18x512xf32, #tpu.memory_space<vmem>>, vector<1x128xf32>
    tpu.vector_store %arg9[%c13_214, %c128_215], %130 {strides = array<i32>} : memref<18x512xf32, #tpu.memory_space<vmem>>, vector<1x128xf32>,
    %c14 = arith.constant 14 : index
    %c0_216 = arith.constant 0 : index
    %132 = vector.load %arg8[%c14, %c0_216] : memref<16x256xf32, #tpu.memory_space<vmem>>, vector<1x128xf32>
    %c13_217 = arith.constant 13 : index
    %c256_218 = arith.constant 256 : index
    %133 = vector.load %arg9[%c13_217, %c256_218] : memref<18x512xf32, #tpu.memory_space<vmem>>, vector<1x128xf32>
    tpu.vector_store %arg9[%c13_217, %c256_218], %132 {strides = array<i32>} : memref<18x512xf32, #tpu.memory_space<vmem>>, vector<1x128xf32>,
    %c15 = arith.constant 15 : index
    %c0_219 = arith.constant 0 : index
    %134 = vector.load %arg8[%c15, %c0_219] : memref<16x256xf32, #tpu.memory_space<vmem>>, vector<1x128xf32>
    %c13_220 = arith.constant 13 : index
    %c384_221 = arith.constant 384 : index
    %135 = vector.load %arg9[%c13_220, %c384_221] : memref<18x512xf32, #tpu.memory_space<vmem>>, vector<1x128xf32>
    tpu.vector_store %arg9[%c13_220, %c384_221], %134 {strides = array<i32>} : memref<18x512xf32, #tpu.memory_space<vmem>>, vector<1x128xf32>,
    %c4_222 = arith.constant 4 : index
    %c64_223 = arith.constant 64 : index
    %136 = vector.load %arg8[%c4_222, %c64_223] : memref<16x256xf32, #tpu.memory_space<vmem>>, vector<1x128xf32>
    %c14_224 = arith.constant 14 : index
    %c0_225 = arith.constant 0 : index
    %137 = vector.load %arg9[%c14_224, %c0_225] : memref<18x512xf32, #tpu.memory_space<vmem>>, vector<1x128xf32>
    tpu.vector_store %arg9[%c14_224, %c0_225], %136 {strides = array<i32>} : memref<18x512xf32, #tpu.memory_space<vmem>>, vector<1x128xf32>,
    %c5_226 = arith.constant 5 : index
    %c64_227 = arith.constant 64 : index
    %138 = vector.load %arg8[%c5_226, %c64_227] : memref<16x256xf32, #tpu.memory_space<vmem>>, vector<1x128xf32>
    %c14_228 = arith.constant 14 : index
    %c128_229 = arith.constant 128 : index
    %139 = vector.load %arg9[%c14_228, %c128_229] : memref<18x512xf32, #tpu.memory_space<vmem>>, vector<1x128xf32>
    tpu.vector_store %arg9[%c14_228, %c128_229], %138 {strides = array<i32>} : memref<18x512xf32, #tpu.memory_space<vmem>>, vector<1x128xf32>,
    %c6_230 = arith.constant 6 : index
    %c64_231 = arith.constant 64 : index
    %140 = vector.load %arg8[%c6_230, %c64_231] : memref<16x256xf32, #tpu.memory_space<vmem>>, vector<1x128xf32>
    %c14_232 = arith.constant 14 : index
    %c256_233 = arith.constant 256 : index
    %141 = vector.load %arg9[%c14_232, %c256_233] : memref<18x512xf32, #tpu.memory_space<vmem>>, vector<1x128xf32>
    tpu.vector_store %arg9[%c14_232, %c256_233], %140 {strides = array<i32>} : memref<18x512xf32, #tpu.memory_space<vmem>>, vector<1x128xf32>,
    %c7_234 = arith.constant 7 : index
    %c64_235 = arith.constant 64 : index
    %142 = vector.load %arg8[%c7_234, %c64_235] : memref<16x256xf32, #tpu.memory_space<vmem>>, vector<1x128xf32>
    %c14_236 = arith.constant 14 : index
    %c384_237 = arith.constant 384 : index
    %143 = vector.load %arg9[%c14_236, %c384_237] : memref<18x512xf32, #tpu.memory_space<vmem>>, vector<1x128xf32>
    tpu.vector_store %arg9[%c14_236, %c384_237], %142 {strides = array<i32>} : memref<18x512xf32, #tpu.memory_space<vmem>>, vector<1x128xf32>,
    %c12_238 = arith.constant 12 : index
    %c64_239 = arith.constant 64 : index
    %144 = vector.load %arg8[%c12_238, %c64_239] : memref<16x256xf32, #tpu.memory_space<vmem>>, vector<1x128xf32>
    %c15_240 = arith.constant 15 : index
    %c0_241 = arith.constant 0 : index
    %145 = vector.load %arg9[%c15_240, %c0_241] : memref<18x512xf32, #tpu.memory_space<vmem>>, vector<1x128xf32>
    tpu.vector_store %arg9[%c15_240, %c0_241], %144 {strides = array<i32>} : memref<18x512xf32, #tpu.memory_space<vmem>>, vector<1x128xf32>,
    %c13_242 = arith.constant 13 : index
    %c64_243 = arith.constant 64 : index
    %146 = vector.load %arg8[%c13_242, %c64_243] : memref<16x256xf32, #tpu.memory_space<vmem>>, vector<1x128xf32>
    %c15_244 = arith.constant 15 : index
    %c128_245 = arith.constant 128 : index
    %147 = vector.load %arg9[%c15_244, %c128_245] : memref<18x512xf32, #tpu.memory_space<vmem>>, vector<1x128xf32>
    tpu.vector_store %arg9[%c15_244, %c128_245], %146 {strides = array<i32>} : memref<18x512xf32, #tpu.memory_space<vmem>>, vector<1x128xf32>,
    %c14_246 = arith.constant 14 : index
    %c64_247 = arith.constant 64 : index
    %148 = vector.load %arg8[%c14_246, %c64_247] : memref<16x256xf32, #tpu.memory_space<vmem>>, vector<1x128xf32>
    %c15_248 = arith.constant 15 : index
    %c256_249 = arith.constant 256 : index
    %149 = vector.load %arg9[%c15_248, %c256_249] : memref<18x512xf32, #tpu.memory_space<vmem>>, vector<1x128xf32>
    tpu.vector_store %arg9[%c15_248, %c256_249], %148 {strides = array<i32>} : memref<18x512xf32, #tpu.memory_space<vmem>>, vector<1x128xf32>,
    %c15_250 = arith.constant 15 : index
    %c64_251 = arith.constant 64 : index
    %150 = vector.load %arg8[%c15_250, %c64_251] : memref<16x256xf32, #tpu.memory_space<vmem>>, vector<1x128xf32>
    %c15_252 = arith.constant 15 : index
    %c384_253 = arith.constant 384 : index
    %151 = vector.load %arg9[%c15_252, %c384_253] : memref<18x512xf32, #tpu.memory_space<vmem>>, vector<1x128xf32>
    tpu.vector_store %arg9[%c15_252, %c384_253], %150 {strides = array<i32>} : memref<18x512xf32, #tpu.memory_space<vmem>>, vector<1x128xf32>,
    %c4_254 = arith.constant 4 : index
    %c128_255 = arith.constant 128 : index
    %152 = vector.load %arg8[%c4_254, %c128_255] : memref<16x256xf32, #tpu.memory_space<vmem>>, vector<1x128xf32>
    %c16 = arith.constant 16 : index
    %c0_256 = arith.constant 0 : index
    %153 = vector.load %arg9[%c16, %c0_256] : memref<18x512xf32, #tpu.memory_space<vmem>>, vector<1x128xf32>
    tpu.vector_store %arg9[%c16, %c0_256], %152 {strides = array<i32>} : memref<18x512xf32, #tpu.memory_space<vmem>>, vector<1x128xf32>,
    %c5_257 = arith.constant 5 : index
    %c128_258 = arith.constant 128 : index
    %154 = vector.load %arg8[%c5_257, %c128_258] : memref<16x256xf32, #tpu.memory_space<vmem>>, vector<1x128xf32>
    %c16_259 = arith.constant 16 : index
    %c128_260 = arith.constant 128 : index
    %155 = vector.load %arg9[%c16_259, %c128_260] : memref<18x512xf32, #tpu.memory_space<vmem>>, vector<1x128xf32>
    tpu.vector_store %arg9[%c16_259, %c128_260], %154 {strides = array<i32>} : memref<18x512xf32, #tpu.memory_space<vmem>>, vector<1x128xf32>,
    %c6_261 = arith.constant 6 : index
    %c128_262 = arith.constant 128 : index
    %156 = vector.load %arg8[%c6_261, %c128_262] : memref<16x256xf32, #tpu.memory_space<vmem>>, vector<1x128xf32>
    %c16_263 = arith.constant 16 : index
    %c256_264 = arith.constant 256 : index
    %157 = vector.load %arg9[%c16_263, %c256_264] : memref<18x512xf32, #tpu.memory_space<vmem>>, vector<1x128xf32>
    tpu.vector_store %arg9[%c16_263, %c256_264], %156 {strides = array<i32>} : memref<18x512xf32, #tpu.memory_space<vmem>>, vector<1x128xf32>,
    %c7_265 = arith.constant 7 : index
    %c128_266 = arith.constant 128 : index
    %158 = vector.load %arg8[%c7_265, %c128_266] : memref<16x256xf32, #tpu.memory_space<vmem>>, vector<1x128xf32>
    %c16_267 = arith.constant 16 : index
    %c384_268 = arith.constant 384 : index
    %159 = vector.load %arg9[%c16_267, %c384_268] : memref<18x512xf32, #tpu.memory_space<vmem>>, vector<1x128xf32>
    tpu.vector_store %arg9[%c16_267, %c384_268], %158 {strides = array<i32>} : memref<18x512xf32, #tpu.memory_space<vmem>>, vector<1x128xf32>,
    %c12_269 = arith.constant 12 : index
    %c128_270 = arith.constant 128 : index
    %160 = vector.load %arg8[%c12_269, %c128_270] : memref<16x256xf32, #tpu.memory_space<vmem>>, vector<1x128xf32>
    %c17 = arith.constant 17 : index
    %c0_271 = arith.constant 0 : index
    %161 = vector.load %arg9[%c17, %c0_271] : memref<18x512xf32, #tpu.memory_space<vmem>>, vector<1x128xf32>
    tpu.vector_store %arg9[%c17, %c0_271], %160 {strides = array<i32>} : memref<18x512xf32, #tpu.memory_space<vmem>>, vector<1x128xf32>,
    %c13_272 = arith.constant 13 : index
    %c128_273 = arith.constant 128 : index
    %162 = vector.load %arg8[%c13_272, %c128_273] : memref<16x256xf32, #tpu.memory_space<vmem>>, vector<1x128xf32>
    %c17_274 = arith.constant 17 : index
    %c128_275 = arith.constant 128 : index
    %163 = vector.load %arg9[%c17_274, %c128_275] : memref<18x512xf32, #tpu.memory_space<vmem>>, vector<1x128xf32>
    tpu.vector_store %arg9[%c17_274, %c128_275], %162 {strides = array<i32>} : memref<18x512xf32, #tpu.memory_space<vmem>>, vector<1x128xf32>,
    %c14_276 = arith.constant 14 : index
    %c128_277 = arith.constant 128 : index
    %164 = vector.load %arg8[%c14_276, %c128_277] : memref<16x256xf32, #tpu.memory_space<vmem>>, vector<1x128xf32>
    %c17_278 = arith.constant 17 : index
    %c256_279 = arith.constant 256 : index
    %165 = vector.load %arg9[%c17_278, %c256_279] : memref<18x512xf32, #tpu.memory_space<vmem>>, vector<1x128xf32>
    tpu.vector_store %arg9[%c17_278, %c256_279], %164 {strides = array<i32>} : memref<18x512xf32, #tpu.memory_space<vmem>>, vector<1x128xf32>,
    %c15_280 = arith.constant 15 : index
    %c128_281 = arith.constant 128 : index
    %166 = vector.load %arg8[%c15_280, %c128_281] : memref<16x256xf32, #tpu.memory_space<vmem>>, vector<1x128xf32>
    %c17_282 = arith.constant 17 : index
    %c384_283 = arith.constant 384 : index
    %167 = vector.load %arg9[%c17_282, %c384_283] : memref<18x512xf32, #tpu.memory_space<vmem>>, vector<1x128xf32>
    tpu.vector_store %arg9[%c17_282, %c384_283], %166 {strides = array<i32>} : memref<18x512xf32, #tpu.memory_space<vmem>>, vector<1x128xf32>,
    %c0_284 = arith.constant 0 : index
    %c0_285 = arith.constant 0 : index
    %168 = vector.load %arg9[%c0_284, %c0_285] : memref<18x512xf32, #tpu.memory_space<vmem>>, vector<18x512xf32>
    %c0_286 = arith.constant 0 : index
    %c0_287 = arith.constant 0 : index
    %169 = vector.load %arg3[%c0_286, %c0_287] : memref<512x64xf32, #tpu.memory_space<vmem>>, vector<512x64xf32>
    %cst_288 = arith.constant dense<0.000000e+00> : vector<18x64xf32>
    %170 = tpu.matmul %168, %169, %cst_288 {dimension_numbers = #tpu.dot_dimension_numbers<[1], [0], [0], [1], [0, 0, 1, 1], [], []>} : vector<18x512xf32>, vector<512x64xf32>, vector<18x64xf32> -> vector<18x64xf32>
    %c0_289 = arith.constant 0 : index
    %c0_290 = arith.constant 0 : index
    %171 = vector.load %arg4[%c0_289, %c0_290] : memref<1x64xf32, #tpu.memory_space<vmem>>, vector<1x64xf32>
    %172 = vector.broadcast %171 : vector<1x64xf32> to vector<18x64xf32>
    %173 = arith.addf %170, %172 : vector<18x64xf32>
    %cst_291 = arith.constant 0.000000e+00 : f32
    %174 = vector.broadcast %cst_291 : f32 to vector<18x64xf32>
    %175 = arith.maximumf %173, %174 : vector<18x64xf32>
    %cst_292 = arith.constant 0.000000e+00 : f32
    %176 = vector.broadcast %cst_292 : f32 to vector<2x6xf32>
    %c0_293 = arith.constant 0 : index
    %c0_294 = arith.constant 0 : index
    %177 = vector.load %arg6[%c0_293, %c0_294] : memref<1x6xf32, #tpu.memory_space<vmem>>, vector<1x6xf32>
    %178 = vector.broadcast %177 : vector<1x6xf32> to vector<2x6xf32>
    %179 = arith.addf %176, %178 : vector<2x6xf32>
    %180 = vector.extract_strided_slice %175 {offsets = [0, 0], sizes = [2, 64], strides = [1, 1]} : vector<18x64xf32> to vector<2x64xf32>
    %c0_295 = arith.constant 0 : index
    %c0_296 = arith.constant 0 : index
    %181 = vector.load %arg5[%c0_295, %c0_296] : memref<576x6xf32, #tpu.memory_space<vmem>>, vector<64x6xf32>
    %cst_297 = arith.constant dense<0.000000e+00> : vector<2x6xf32>
    %182 = tpu.matmul %180, %181, %cst_297 {dimension_numbers = #tpu.dot_dimension_numbers<[1], [0], [0], [1], [0, 0, 1, 1], [], []>} : vector<2x64xf32>, vector<64x6xf32>, vector<2x6xf32> -> vector<2x6xf32>
    %183 = arith.addf %179, %182 : vector<2x6xf32>
    %184 = vector.extract_strided_slice %175 {offsets = [2, 0], sizes = [2, 64], strides = [1, 1]} : vector<18x64xf32> to vector<2x64xf32>
    %c64_298 = arith.constant 64 : index
    %c0_299 = arith.constant 0 : index
    %185 = vector.load %arg5[%c64_298, %c0_299] : memref<576x6xf32, #tpu.memory_space<vmem>>, vector<64x6xf32>
    %cst_300 = arith.constant dense<0.000000e+00> : vector<2x6xf32>
    %186 = tpu.matmul %184, %185, %cst_300 {dimension_numbers = #tpu.dot_dimension_numbers<[1], [0], [0], [1], [0, 0, 1, 1], [], []>} : vector<2x64xf32>, vector<64x6xf32>, vector<2x6xf32> -> vector<2x6xf32>
    %187 = arith.addf %183, %186 : vector<2x6xf32>
    %188 = vector.extract_strided_slice %175 {offsets = [4, 0], sizes = [2, 64], strides = [1, 1]} : vector<18x64xf32> to vector<2x64xf32>
    %c128_301 = arith.constant 128 : index
    %c0_302 = arith.constant 0 : index
    %189 = vector.load %arg5[%c128_301, %c0_302] : memref<576x6xf32, #tpu.memory_space<vmem>>, vector<64x6xf32>
    %cst_303 = arith.constant dense<0.000000e+00> : vector<2x6xf32>
    %190 = tpu.matmul %188, %189, %cst_303 {dimension_numbers = #tpu.dot_dimension_numbers<[1], [0], [0], [1], [0, 0, 1, 1], [], []>} : vector<2x64xf32>, vector<64x6xf32>, vector<2x6xf32> -> vector<2x6xf32>
    %191 = arith.addf %187, %190 : vector<2x6xf32>
    %192 = vector.extract_strided_slice %175 {offsets = [6, 0], sizes = [2, 64], strides = [1, 1]} : vector<18x64xf32> to vector<2x64xf32>
    %c192_304 = arith.constant 192 : index
    %c0_305 = arith.constant 0 : index
    %193 = vector.load %arg5[%c192_304, %c0_305] : memref<576x6xf32, #tpu.memory_space<vmem>>, vector<64x6xf32>
    %cst_306 = arith.constant dense<0.000000e+00> : vector<2x6xf32>
    %194 = tpu.matmul %192, %193, %cst_306 {dimension_numbers = #tpu.dot_dimension_numbers<[1], [0], [0], [1], [0, 0, 1, 1], [], []>} : vector<2x64xf32>, vector<64x6xf32>, vector<2x6xf32> -> vector<2x6xf32>
    %195 = arith.addf %191, %194 : vector<2x6xf32>
    %196 = vector.extract_strided_slice %175 {offsets = [8, 0], sizes = [2, 64], strides = [1, 1]} : vector<18x64xf32> to vector<2x64xf32>
    %c256_307 = arith.constant 256 : index
    %c0_308 = arith.constant 0 : index
    %197 = vector.load %arg5[%c256_307, %c0_308] : memref<576x6xf32, #tpu.memory_space<vmem>>, vector<64x6xf32>
    %cst_309 = arith.constant dense<0.000000e+00> : vector<2x6xf32>
    %198 = tpu.matmul %196, %197, %cst_309 {dimension_numbers = #tpu.dot_dimension_numbers<[1], [0], [0], [1], [0, 0, 1, 1], [], []>} : vector<2x64xf32>, vector<64x6xf32>, vector<2x6xf32> -> vector<2x6xf32>
    %199 = arith.addf %195, %198 : vector<2x6xf32>
    %200 = vector.extract_strided_slice %175 {offsets = [10, 0], sizes = [2, 64], strides = [1, 1]} : vector<18x64xf32> to vector<2x64xf32>
    %c320 = arith.constant 320 : index
    %c0_310 = arith.constant 0 : index
    %201 = vector.load %arg5[%c320, %c0_310] : memref<576x6xf32, #tpu.memory_space<vmem>>, vector<64x6xf32>
    %cst_311 = arith.constant dense<0.000000e+00> : vector<2x6xf32>
    %202 = tpu.matmul %200, %201, %cst_311 {dimension_numbers = #tpu.dot_dimension_numbers<[1], [0], [0], [1], [0, 0, 1, 1], [], []>} : vector<2x64xf32>, vector<64x6xf32>, vector<2x6xf32> -> vector<2x6xf32>
    %203 = arith.addf %199, %202 : vector<2x6xf32>
    %204 = vector.extract_strided_slice %175 {offsets = [12, 0], sizes = [2, 64], strides = [1, 1]} : vector<18x64xf32> to vector<2x64xf32>
    %c384_312 = arith.constant 384 : index
    %c0_313 = arith.constant 0 : index
    %205 = vector.load %arg5[%c384_312, %c0_313] : memref<576x6xf32, #tpu.memory_space<vmem>>, vector<64x6xf32>
    %cst_314 = arith.constant dense<0.000000e+00> : vector<2x6xf32>
    %206 = tpu.matmul %204, %205, %cst_314 {dimension_numbers = #tpu.dot_dimension_numbers<[1], [0], [0], [1], [0, 0, 1, 1], [], []>} : vector<2x64xf32>, vector<64x6xf32>, vector<2x6xf32> -> vector<2x6xf32>
    %207 = arith.addf %203, %206 : vector<2x6xf32>
    %208 = vector.extract_strided_slice %175 {offsets = [14, 0], sizes = [2, 64], strides = [1, 1]} : vector<18x64xf32> to vector<2x64xf32>
    %c448 = arith.constant 448 : index
    %c0_315 = arith.constant 0 : index
    %209 = vector.load %arg5[%c448, %c0_315] : memref<576x6xf32, #tpu.memory_space<vmem>>, vector<64x6xf32>
    %cst_316 = arith.constant dense<0.000000e+00> : vector<2x6xf32>
    %210 = tpu.matmul %208, %209, %cst_316 {dimension_numbers = #tpu.dot_dimension_numbers<[1], [0], [0], [1], [0, 0, 1, 1], [], []>} : vector<2x64xf32>, vector<64x6xf32>, vector<2x6xf32> -> vector<2x6xf32>
    %211 = arith.addf %207, %210 : vector<2x6xf32>
    %212 = vector.extract_strided_slice %175 {offsets = [16, 0], sizes = [2, 64], strides = [1, 1]} : vector<18x64xf32> to vector<2x64xf32>
    %c512 = arith.constant 512 : index
    %c0_317 = arith.constant 0 : index
    %213 = vector.load %arg5[%c512, %c0_317] : memref<576x6xf32, #tpu.memory_space<vmem>>, vector<64x6xf32>
    %cst_318 = arith.constant dense<0.000000e+00> : vector<2x6xf32>
    %214 = tpu.matmul %212, %213, %cst_318 {dimension_numbers = #tpu.dot_dimension_numbers<[1], [0], [0], [1], [0, 0, 1, 1], [], []>} : vector<2x64xf32>, vector<64x6xf32>, vector<2x6xf32> -> vector<2x6xf32>
    %215 = arith.addf %211, %214 : vector<2x6xf32>
    %c0_319 = arith.constant 0 : index
    %c0_320 = arith.constant 0 : index
    %216 = vector.load %arg7[%c0_319, %c0_320] : memref<2x6xf32, #tpu.memory_space<vmem>>, vector<2x6xf32>
    tpu.vector_store %arg7[%c0_319, %c0_320], %215 {strides = array<i32>} : memref<2x6xf32, #tpu.memory_space<vmem>>, vector<2x6xf32>,
    return
  }
}

</mosaic_0001>

<llo_original>
// kernel: dqn_forward.1
$region0: #{dqn_forward.1}
  #allocation0 [shape = 'u32[]', space=smem, size = 0x4, offset = 0x4, fixed_abs, tag = 'smem constant byte address 0x4 - core index']
  #allocation1 [shape = 'u32[144,128]{1,0:T(1,128)}', space=vmem, size = 0x12000, scoped, tag = 'internal scratch']
  #allocation2 [shape = 'f32[16,256]{1,0:T(8,128)}', space=vmem, size = 0x4000, scoped, tag = 'scratch operand']
  #allocation3 [shape = 'f32[18,512]{1,0:T(8,128)}', space=vmem, size = 0xc000, scoped, tag = 'scratch operand']
  %s0 = inlined_call_operand.vmem [shape: f32[128,256], index: 0, kind: input, shape index: {}]
  %s1 = inlined_call_operand.vmem [shape: f32[256,32], index: 1, kind: input, shape index: {}]
  %s2 = inlined_call_operand.vmem [shape: f32[1,32], index: 2, kind: input, shape index: {}]
  %s3 = inlined_call_operand.vmem [shape: f32[512,64], index: 3, kind: input, shape index: {}]
  %s4 = inlined_call_operand.vmem [shape: f32[1,64], index: 4, kind: input, shape index: {}]
  %s5 = inlined_call_operand.vmem [shape: f32[576,6], index: 5, kind: input, shape index: {}]
  %s6 = inlined_call_operand.vmem [shape: f32[1,6], index: 6, kind: input, shape index: {}]
  %s7 = inlined_call_operand.hbm [shape: f32[2,6], index: 7, kind: output, shape index: {}]
  %s8 = sld [smem:[#allocation0]]
  $region38: #{dqn_forward.1} parent=0
    _
  %s10 = ssub.s32 1, %s8
  %s11 = scalar_select 0, %s10, %s8
  $region1: #{dqn_forward.1} parent=0
    #allocation4 [shape = 'u8[1024]{0}', space=vmem, size = 0x400, scoped, tag = 'output window, operand 0, single buffered']
    #allocation5 [shape = 's32[1]{0}', space=sflag, size = 0x4, scoped, tag = 'scoped memory for dqn_forward.1']
    %12 = vsyncpa [#allocation5], 0
    // Predicated region
    $region2: #{dqn_forward.1} parent=1 // pred_check
      _
    $region3: #{dqn_forward.1} parent=1 // pred_check_branch
      %14 = sbr.rel (0) target = $region5
    $region4: #{dqn_forward.1} parent=1 // pred_region
      _
    $region5: #{dqn_forward.1} parent=1 // pred_fallthru
      _
    // Predicated region
    $region6: #{dqn_forward.1} parent=1 // pred_check
      _
    $region7: #{dqn_forward.1} parent=1 // pred_check_branch
      %16 = sbr.rel (0) target = $region9
    $region8: #{dqn_forward.1} parent=1 // pred_region
      _
    $region9: #{dqn_forward.1} parent=1 // pred_fallthru
      _
    // Predicated region
    $region10: #{dqn_forward.1} parent=1 // pred_check
      _
    $region11: #{dqn_forward.1} parent=1 // pred_check_branch
      %18 = sbr.rel (0) target = $region13
    $region12: #{dqn_forward.1} parent=1 // pred_region
      _
    $region13: #{dqn_forward.1} parent=1 // pred_fallthru
      _
    // Predicated region
    $region14: #{dqn_forward.1} parent=1 // pred_check
      _
    $region15: #{dqn_forward.1} parent=1 // pred_check_branch
      %20 = sbr.rel (0) target = $region17
    $region16: #{dqn_forward.1} parent=1 // pred_region
      _
    $region17: #{dqn_forward.1} parent=1 // pred_fallthru
      _
    // Predicated region
    $region18: #{dqn_forward.1} parent=1 // pred_check
      _
    $region19: #{dqn_forward.1} parent=1 // pred_check_branch
      %22 = sbr.rel (0) target = $region21
    $region20: #{dqn_forward.1} parent=1 // pred_region
      _
    $region21: #{dqn_forward.1} parent=1 // pred_fallthru
      _
    // Predicated region
    $region22: #{dqn_forward.1} parent=1 // pred_check
      _
    $region23: #{dqn_forward.1} parent=1 // pred_check_branch
      %24 = sbr.rel (0) target = $region25
    $region24: #{dqn_forward.1} parent=1 // pred_region
      _
    $region25: #{dqn_forward.1} parent=1 // pred_fallthru
      _
    // Predicated region
    $region26: #{dqn_forward.1} parent=1 // pred_check
      _
    $region27: #{dqn_forward.1} parent=1 // pred_check_branch
      %26 = sbr.rel (0) target = $region29
    $region28: #{dqn_forward.1} parent=1 // pred_region
      _
    $region29: #{dqn_forward.1} parent=1 // pred_fallthru
      _
    %v27 = vld [vmem:[%s0] sm:$0xff]
    %v28 = vld [vmem:[%s0 + $0x8] sm:$0xff]
    %v29 = vld [vmem:[%s0 + $0x10] sm:$0xff]
    %v30 = vld [vmem:[%s0 + $0x18] sm:$0xff]
    %v31 = vld [vmem:[%s0 + $0x20] sm:$0xff]
    %v32 = vld [vmem:[%s0 + $0x28] sm:$0xff]
    %v33 = vld [vmem:[%s0 + $0x30] sm:$0xff]
    %v34 = vld [vmem:[%s0 + $0x38] sm:$0xff]
    %v35 = vld [vmem:[%s0 + $0x40] sm:$0xff]
    %v36 = vld [vmem:[%s0 + $0x48] sm:$0xff]
    %v37 = vld [vmem:[%s0 + $0x50] sm:$0xff]
    %v38 = vld [vmem:[%s0 + $0x58] sm:$0xff]
    %v39 = vld [vmem:[%s0 + $0x60] sm:$0xff]
    %v40 = vld [vmem:[%s0 + $0x68] sm:$0xff]
    %v41 = vld [vmem:[%s0 + $0x70] sm:$0xff]
    %v42 = vld [vmem:[%s0 + $0x78] sm:$0xff]
    %v43 = vld [vmem:[%s0 + $0x80] sm:$0xff]
    %v44 = vld [vmem:[%s0 + $0x88] sm:$0xff]
    %v45 = vld [vmem:[%s0 + $0x90] sm:$0xff]
    %v46 = vld [vmem:[%s0 + $0x98] sm:$0xff]
    %v47 = vld [vmem:[%s0 + $0xa0] sm:$0xff]
    %v48 = vld [vmem:[%s0 + $0xa8] sm:$0xff]
    %v49 = vld [vmem:[%s0 + $0xb0] sm:$0xff]
    %v50 = vld [vmem:[%s0 + $0xb8] sm:$0xff]
    %v51 = vld [vmem:[%s0 + $0xc0] sm:$0xff]
    %v52 = vld [vmem:[%s0 + $0xc8] sm:$0xff]
    %v53 = vld [vmem:[%s0 + $0xd0] sm:$0xff]
    %v54 = vld [vmem:[%s0 + $0xd8] sm:$0xff]
    %v55 = vld [vmem:[%s0 + $0xe0] sm:$0xff]
    %v56 = vld [vmem:[%s0 + $0xe8] sm:$0xff]
    %v57 = vld [vmem:[%s0 + $0xf0] sm:$0xff]
    %v58 = vld [vmem:[%s0 + $0xf8] sm:$0xff]
    %v59 = vld [vmem:[%s1] sm:$0xff]
    %v60 = vld [vmem:[%s1 + $0x8] sm:$0xff]
    %v61 = vld [vmem:[%s1 + $0x10] sm:$0xff]
    %v62 = vld [vmem:[%s1 + $0x18] sm:$0xff]
    %v63 = vld [vmem:[%s1 + $0x20] sm:$0xff]
    %v64 = vld [vmem:[%s1 + $0x28] sm:$0xff]
    %v65 = vld [vmem:[%s1 + $0x30] sm:$0xff]
    %v66 = vld [vmem:[%s1 + $0x38] sm:$0xff]
    %v67 = vld [vmem:[%s1 + $0x40] sm:$0xff]
    %v68 = vld [vmem:[%s1 + $0x48] sm:$0xff]
    %v69 = vld [vmem:[%s1 + $0x50] sm:$0xff]
    %v70 = vld [vmem:[%s1 + $0x58] sm:$0xff]
    %v71 = vld [vmem:[%s1 + $0x60] sm:$0xff]
    %v72 = vld [vmem:[%s1 + $0x68] sm:$0xff]
    %v73 = vld [vmem:[%s1 + $0x70] sm:$0xff]
    %v74 = vld [vmem:[%s1 + $0x78] sm:$0xff]
    %v75 = vld [vmem:[%s1 + $0x80] sm:$0xff]
    %v76 = vld [vmem:[%s1 + $0x88] sm:$0xff]
    %v77 = vld [vmem:[%s1 + $0x90] sm:$0xff]
    %v78 = vld [vmem:[%s1 + $0x98] sm:$0xff]
    %v79 = vld [vmem:[%s1 + $0xa0] sm:$0xff]
    %v80 = vld [vmem:[%s1 + $0xa8] sm:$0xff]
    %v81 = vld [vmem:[%s1 + $0xb0] sm:$0xff]
    %v82 = vld [vmem:[%s1 + $0xb8] sm:$0xff]
    %v83 = vld [vmem:[%s1 + $0xc0] sm:$0xff]
    %v84 = vld [vmem:[%s1 + $0xc8] sm:$0xff]
    %v85 = vld [vmem:[%s1 + $0xd0] sm:$0xff]
    %v86 = vld [vmem:[%s1 + $0xd8] sm:$0xff]
    %v87 = vld [vmem:[%s1 + $0xe0] sm:$0xff]
    %v88 = vld [vmem:[%s1 + $0xe8] sm:$0xff]
    %v89 = vld [vmem:[%s1 + $0xf0] sm:$0xff]
    %v90 = vld [vmem:[%s1 + $0xf8] sm:$0xff]
    %v91 = vld [vmem:[%s2] sm:$0x1]
    %v93 = vlaneseq
    %v94 = vshrl.u32 %v93, 7
    %v95 = vsub.s32 0, %v94
    %v96 = vrot.slane %v91, %v95
    %98 = vmatprep.subr.mxu0 0.0
    %99 = vmatpush1.msra.mxu0 %v59
    %100 = vmatprep.subr.mxu0 0.0
    %101 = vmatpush1.msra.mxu0 %v60
    %102 = vmatprep.subr.mxu0 0.0
    %103 = vmatpush1.msra.mxu0 %v61
    %104 = vmatprep.subr.mxu0 0.0
    %105 = vmatpush1.msra.mxu0 %v62
    %106 = vmatprep.subr.mxu0 0.0
    %107 = vmatpush1.msra.mxu0 %v63
    %108 = vmatprep.subr.mxu0 0.0
    %109 = vmatpush1.msra.mxu0 %v64
    %110 = vmatprep.subr.mxu0 0.0
    %111 = vmatpush1.msra.mxu0 %v65
    %112 = vmatprep.subr.mxu0 0.0
    %113 = vmatpush1.msra.mxu0 %v66
    %114 = vmatprep.subr.mxu0 0.0
    %115 = vmatpush1.msra.mxu0 %v67
    %116 = vmatprep.subr.mxu0 0.0
    %117 = vmatpush1.msra.mxu0 %v68
    %118 = vmatprep.subr.mxu0 0.0
    %119 = vmatpush1.msra.mxu0 %v69
    %120 = vmatprep.subr.mxu0 0.0
    %121 = vmatpush1.msra.mxu0 %v70
    %122 = vmatprep.subr.mxu0 0.0
    %123 = vmatpush1.msra.mxu0 %v71
    %124 = vmatprep.subr.mxu0 0.0
    %125 = vmatpush1.msra.mxu0 %v72
    %126 = vmatprep.subr.mxu0 0.0
    %127 = vmatpush1.msra.mxu0 %v73
    %128 = vmatprep.subr.mxu0 0.0
    %129 = vmatpush1.msra.mxu0 %v74
    %130 = vmatprep.subr.mxu0 0.0
    %131 = vmatpush1.msra.mxu0 %v75
    %132 = vmatprep.subr.mxu0 0.0
    %133 = vmatpush1.msra.mxu0 %v76
    %134 = vmatprep.subr.mxu0 0.0
    %135 = vmatpush1.msra.mxu0 %v77
    %136 = vmatprep.subr.mxu0 0.0
    %137 = vmatpush1.msra.mxu0 %v78
    %138 = vmatprep.subr.mxu0 0.0
    %139 = vmatpush1.msra.mxu0 %v79
    %140 = vmatprep.subr.mxu0 0.0
    %141 = vmatpush1.msra.mxu0 %v80
    %142 = vmatprep.subr.mxu0 0.0
    %143 = vmatpush1.msra.mxu0 %v81
    %144 = vmatprep.subr.mxu0 0.0
    %145 = vmatpush1.msra.mxu0 %v82
    %146 = vmatprep.subr.mxu0 0.0
    %147 = vmatpush1.msra.mxu0 %v83
    %148 = vmatprep.subr.mxu0 0.0
    %149 = vmatpush1.msra.mxu0 %v84
    %150 = vmatprep.subr.mxu0 0.0
    %151 = vmatpush1.msra.mxu0 %v85
    %152 = vmatprep.subr.mxu0 0.0
    %153 = vmatpush1.msra.mxu0 %v86
    %154 = vmatprep.subr.mxu0 0.0
    %155 = vmatpush1.msra.mxu0 %v87
    %156 = vmatprep.subr.mxu0 0.0
    %157 = vmatpush1.msra.mxu0 %v88
    %158 = vmatprep.subr.mxu0 0.0
    %159 = vmatpush1.msra.mxu0 %v89
    %160 = vmatprep.subr.mxu0 0.0
    %161 = vmatpush1.msra.mxu0 %v90
    %162 = vmatprep.mubr.f32.mxu0 %v28
    %163 = vmatmul.mubr.f32.gmra.mrb[0].mxu0 %v27
    %v164 = vpop.f32.mrb[0].mxu0
    %v165 = vadd.f32 %v96, %v164
    %v166 = vpop.f32.mrb[0].mxu0
    %167 = vmatprep.mubr.f32.mxu0 %v30
    %168 = vmatmul.mubr.f32.gmra.mrb[0].mxu0 %v29
    %v169 = vpop.f32.mrb[0].mxu0
    %v170 = vadd.f32 %v96, %v169
    %v171 = vpop.f32.mrb[0].mxu0
    %172 = vmatprep.mubr.f32.mxu0 %v32
    %173 = vmatmul.mubr.f32.gmra.mrb[0].mxu0 %v31
    %v174 = vpop.f32.mrb[0].mxu0
    %v175 = vadd.f32 %v96, %v174
    %v176 = vpop.f32.mrb[0].mxu0
    %177 = vmatprep.mubr.f32.mxu0 %v34
    %178 = vmatmul.mubr.f32.gmra.mrb[0].mxu0 %v33
    %v179 = vpop.f32.mrb[0].mxu0
    %v180 = vadd.f32 %v96, %v179
    %v181 = vpop.f32.mrb[0].mxu0
    %182 = vmatprep.mubr.f32.mxu0 %v36
    %183 = vmatmul.mubr.f32.gmra.mrb[0].mxu0 %v35
    %v184 = vpop.f32.mrb[0].mxu0
    %v185 = vadd.f32 %v96, %v184
    %v186 = vpop.f32.mrb[0].mxu0
    %187 = vmatprep.mubr.f32.mxu0 %v38
    %188 = vmatmul.mubr.f32.gmra.mrb[0].mxu0 %v37
    %v189 = vpop.f32.mrb[0].mxu0
    %v190 = vadd.f32 %v96, %v189
    %v191 = vpop.f32.mrb[0].mxu0
    %192 = vmatprep.mubr.f32.mxu0 %v40
    %193 = vmatmul.mubr.f32.gmra.mrb[0].mxu0 %v39
    %v194 = vpop.f32.mrb[0].mxu0
    %v195 = vadd.f32 %v96, %v194
    %v196 = vpop.f32.mrb[0].mxu0
    %197 = vmatprep.mubr.f32.mxu0 %v42
    %198 = vmatmul.mubr.f32.gmra.mrb[0].mxu0 %v41
    %v199 = vpop.f32.mrb[0].mxu0
    %v200 = vadd.f32 %v96, %v199
    %v201 = vpop.f32.mrb[0].mxu0
    %202 = vmatprep.mubr.f32.mxu0 %v44
    %203 = vmatmul.mubr.f32.gmra.mrb[0].mxu0 %v43
    %v204 = vpop.f32.mrb[0].mxu0
    %v205 = vadd.f32 %v96, %v204
    %v206 = vpop.f32.mrb[0].mxu0
    %207 = vmatprep.mubr.f32.mxu0 %v46
    %208 = vmatmul.mubr.f32.gmra.mrb[0].mxu0 %v45
    %v209 = vpop.f32.mrb[0].mxu0
    %v210 = vadd.f32 %v96, %v209
    %v211 = vpop.f32.mrb[0].mxu0
    %212 = vmatprep.mubr.f32.mxu0 %v48
    %213 = vmatmul.mubr.f32.gmra.mrb[0].mxu0 %v47
    %v214 = vpop.f32.mrb[0].mxu0
    %v215 = vadd.f32 %v96, %v214
    %v216 = vpop.f32.mrb[0].mxu0
    %217 = vmatprep.mubr.f32.mxu0 %v50
    %218 = vmatmul.mubr.f32.gmra.mrb[0].mxu0 %v49
    %v219 = vpop.f32.mrb[0].mxu0
    %v220 = vadd.f32 %v96, %v219
    %v221 = vpop.f32.mrb[0].mxu0
    %222 = vmatprep.mubr.f32.mxu0 %v52
    %223 = vmatmul.mubr.f32.gmra.mrb[0].mxu0 %v51
    %v224 = vpop.f32.mrb[0].mxu0
    %v225 = vadd.f32 %v96, %v224
    %v226 = vpop.f32.mrb[0].mxu0
    %227 = vmatprep.mubr.f32.mxu0 %v54
    %228 = vmatmul.mubr.f32.gmra.mrb[0].mxu0 %v53
    %v229 = vpop.f32.mrb[0].mxu0
    %v230 = vadd.f32 %v96, %v229
    %v231 = vpop.f32.mrb[0].mxu0
    %232 = vmatprep.mubr.f32.mxu0 %v56
    %233 = vmatmul.mubr.f32.gmra.mrb[0].mxu0 %v55
    %v234 = vpop.f32.mrb[0].mxu0
    %v235 = vadd.f32 %v96, %v234
    %v236 = vpop.f32.mrb[0].mxu0
    %237 = vmatprep.mubr.f32.mxu0 %v58
    %238 = vmatmul.mubr.f32.gmra.mrb[0].mxu0 %v57
    %v239 = vpop.f32.mrb[0].mxu0
    %v240 = vadd.f32 %v96, %v239
    %v241 = vpop.f32.mrb[0].mxu0
    %242 = vdwg.mxu0
    %v243 = vmax.f32 %v165, 0.0
    %v244 = vmax.f32 %v170, 0.0
    %v245 = vmax.f32 %v175, 0.0
    %v246 = vmax.f32 %v180, 0.0
    %v247 = vmax.f32 %v185, 0.0
    %v248 = vmax.f32 %v190, 0.0
    %v249 = vmax.f32 %v195, 0.0
    %v250 = vmax.f32 %v200, 0.0
    %v251 = vmax.f32 %v205, 0.0
    %v252 = vmax.f32 %v210, 0.0
    %v253 = vmax.f32 %v215, 0.0
    %v254 = vmax.f32 %v220, 0.0
    %v255 = vmax.f32 %v225, 0.0
    %v256 = vmax.f32 %v230, 0.0
    %v257 = vmax.f32 %v235, 0.0
    %v258 = vmax.f32 %v240, 0.0
    %vm259 = vcmask 261120
    %260 = vst.msk [vmem:[#allocation2] sm:$0xff] %vm259, %v243
    %261 = vst.msk [vmem:[#allocation2 + $0x10] sm:$0xff] %vm259, %v244
    %264 = vrot.lane.b32.xlu0 %v245, 32
    %v265 = vpop.permute.xlu0 %264
    %266 = vrot.lane.b32.xlu0 %v246, 32
    %v267 = vpop.permute.xlu0 %266
    %vm270 = vcmask 523520
    %271 = vst.msk [vmem:[#allocation2] sm:$0xff] %vm270, %v265
    %272 = vst.msk [vmem:[#allocation2 + $0x10] sm:$0xff] %vm270, %v267
    %275 = vrot.lane.b32.xlu0 %v247, 64
    %v276 = vpop.permute.xlu0 %275
    %277 = vrot.lane.b32.xlu0 %v248, 64
    %v278 = vpop.permute.xlu0 %277
    %vm281 = vcmask 785920
    %282 = vst.msk [vmem:[#allocation2] sm:$0xff] %vm281, %v276
    %283 = vst.msk [vmem:[#allocation2 + $0x10] sm:$0xff] %vm281, %v278
    %286 = vrot.lane.b32.xlu0 %v249, 96
    %v287 = vpop.permute.xlu0 %286
    %288 = vrot.lane.b32.xlu0 %v250, 96
    %v289 = vpop.permute.xlu0 %288
    %vm292 = vcmask 1048320
    %293 = vst.msk [vmem:[#allocation2] sm:$0xff] %vm292, %v287
    %294 = vst.msk [vmem:[#allocation2 + $0x10] sm:$0xff] %vm292, %v289
    %295 = vst.msk [vmem:[#allocation2 + $0x8] sm:$0xff] %vm259, %v251
    %296 = vst.msk [vmem:[#allocation2 + $0x18] sm:$0xff] %vm259, %v252
    %299 = vrot.lane.b32.xlu0 %v253, 32
    %v300 = vpop.permute.xlu0 %299
    %301 = vrot.lane.b32.xlu0 %v254, 32
    %v302 = vpop.permute.xlu0 %301
    %305 = vst.msk [vmem:[#allocation2 + $0x8] sm:$0xff] %vm270, %v300
    %306 = vst.msk [vmem:[#allocation2 + $0x18] sm:$0xff] %vm270, %v302
    %309 = vrot.lane.b32.xlu0 %v255, 64
    %v310 = vpop.permute.xlu0 %309
    %311 = vrot.lane.b32.xlu0 %v256, 64
    %v312 = vpop.permute.xlu0 %311
    %315 = vst.msk [vmem:[#allocation2 + $0x8] sm:$0xff] %vm281, %v310
    %316 = vst.msk [vmem:[#allocation2 + $0x18] sm:$0xff] %vm281, %v312
    %319 = vrot.lane.b32.xlu0 %v257, 96
    %v320 = vpop.permute.xlu0 %319
    %321 = vrot.lane.b32.xlu0 %v258, 96
    %v322 = vpop.permute.xlu0 %321
    %325 = vst.msk [vmem:[#allocation2 + $0x8] sm:$0xff] %vm292, %v320
    %326 = vst.msk [vmem:[#allocation2 + $0x18] sm:$0xff] %vm292, %v322
    %v327 = vld [vmem:[#allocation2] ss:$0 sm:$0xff]
    %328 = vst [vmem:[#allocation3] sm:$0x1] %v327
    %v329 = vld [vmem:[#allocation2 + $0x1] ss:$0 sm:$0xff]
    %330 = vst [vmem:[#allocation3 + $0x8] sm:$0x1] %v329
    %v331 = vld [vmem:[#allocation2 + $0x2] ss:$0 sm:$0xff]
    %332 = vst [vmem:[#allocation3 + $0x10] sm:$0x1] %v331
    %v333 = vld [vmem:[#allocation2 + $0x3] ss:$0 sm:$0xff]
    %334 = vst [vmem:[#allocation3 + $0x18] sm:$0x1] %v333
    %v335 = vld [vmem:[#allocation2 + $0x10] ss:$0 sm:$0xff]
    %336 = vst [vmem:[#allocation3 + $0x1] sm:$0x1] %v335
    %v337 = vld [vmem:[#allocation2 + $0x11] ss:$0 sm:$0xff]
    %338 = vst [vmem:[#allocation3 + $0x9] sm:$0x1] %v337
    %v339 = vld [vmem:[#allocation2 + $0x12] ss:$0 sm:$0xff]
    %340 = vst [vmem:[#allocation3 + $0x11] sm:$0x1] %v339
    %v341 = vld [vmem:[#allocation2 + $0x13] ss:$0 sm:$0xff]
    %342 = vst [vmem:[#allocation3 + $0x19] sm:$0x1] %v341
    %v343 = vld [vmem:[#allocation2] ss:$0 sm:$0xff]
    %v344 = vld [vmem:[#allocation2 + $0x8] ss:$0 sm:$0xff]
    %347 = vrot.lane.b32.xlu0 %v343, 64
    %v348 = vpop.permute.xlu0 %347
    %349 = vrot.lane.b32.xlu0 %v344, 64
    %v350 = vpop.permute.xlu0 %349
    %vm351 = vcmask 523264
    %v352 = vsel %vm351, %v348, %v350
    %354 = vst [vmem:[#allocation3 + $0x2] sm:$0x1] %v352
    %v355 = vld [vmem:[#allocation2 + $0x1] ss:$0 sm:$0xff]
    %v356 = vld [vmem:[#allocation2 + $0x9] ss:$0 sm:$0xff]
    %359 = vrot.lane.b32.xlu0 %v355, 64
    %v360 = vpop.permute.xlu0 %359
    %361 = vrot.lane.b32.xlu0 %v356, 64
    %v362 = vpop.permute.xlu0 %361
    %v363 = vsel %vm351, %v360, %v362
    %365 = vst [vmem:[#allocation3 + $0xa] sm:$0x1] %v363
    %v366 = vld [vmem:[#allocation2 + $0x2] ss:$0 sm:$0xff]
    %v367 = vld [vmem:[#allocation2 + $0xa] ss:$0 sm:$0xff]
    %370 = vrot.lane.b32.xlu0 %v366, 64
    %v371 = vpop.permute.xlu0 %370
    %372 = vrot.lane.b32.xlu0 %v367, 64
    %v373 = vpop.permute.xlu0 %372
    %v374 = vsel %vm351, %v371, %v373
    %376 = vst [vmem:[#allocation3 + $0x12] sm:$0x1] %v374
    %v377 = vld [vmem:[#allocation2 + $0x3] ss:$0 sm:$0xff]
    %v378 = vld [vmem:[#allocation2 + $0xb] ss:$0 sm:$0xff]
    %381 = vrot.lane.b32.xlu0 %v377, 64
    %v382 = vpop.permute.xlu0 %381
    %383 = vrot.lane.b32.xlu0 %v378, 64
    %v384 = vpop.permute.xlu0 %383
    %v385 = vsel %vm351, %v382, %v384
    %387 = vst [vmem:[#allocation3 + $0x1a] sm:$0x1] %v385
    %v388 = vld [vmem:[#allocation2 + $0x10] ss:$0 sm:$0xff]
    %v389 = vld [vmem:[#allocation2 + $0x18] ss:$0 sm:$0xff]
    %392 = vrot.lane.b32.xlu0 %v388, 64
    %v393 = vpop.permute.xlu0 %392
    %394 = vrot.lane.b32.xlu0 %v389, 64
    %v395 = vpop.permute.xlu0 %394
    %v396 = vsel %vm351, %v393, %v395
    %398 = vst [vmem:[#allocation3 + $0x3] sm:$0x1] %v396
    %v399 = vld [vmem:[#allocation2 + $0x11] ss:$0 sm:$0xff]
    %v400 = vld [vmem:[#allocation2 + $0x19] ss:$0 sm:$0xff]
    %403 = vrot.lane.b32.xlu0 %v399, 64
    %v404 = vpop.permute.xlu0 %403
    %405 = vrot.lane.b32.xlu0 %v400, 64
    %v406 = vpop.permute.xlu0 %405
    %v407 = vsel %vm351, %v404, %v406
    %409 = vst [vmem:[#allocation3 + $0xb] sm:$0x1] %v407
    %v410 = vld [vmem:[#allocation2 + $0x12] ss:$0 sm:$0xff]
    %v411 = vld [vmem:[#allocation2 + $0x1a] ss:$0 sm:$0xff]
    %414 = vrot.lane.b32.xlu0 %v410, 64
    %v415 = vpop.permute.xlu0 %414
    %416 = vrot.lane.b32.xlu0 %v411, 64
    %v417 = vpop.permute.xlu0 %416
    %v418 = vsel %vm351, %v415, %v417
    %420 = vst [vmem:[#allocation3 + $0x13] sm:$0x1] %v418
    %v421 = vld [vmem:[#allocation2 + $0x13] ss:$0 sm:$0xff]
    %v422 = vld [vmem:[#allocation2 + $0x1b] ss:$0 sm:$0xff]
    %425 = vrot.lane.b32.xlu0 %v421, 64
    %v426 = vpop.permute.xlu0 %425
    %427 = vrot.lane.b32.xlu0 %v422, 64
    %v428 = vpop.permute.xlu0 %427
    %v429 = vsel %vm351, %v426, %v428
    %431 = vst [vmem:[#allocation3 + $0x1b] sm:$0x1] %v429
    %v432 = vld [vmem:[#allocation2 + $0x8] ss:$0 sm:$0xff]
    %433 = vst [vmem:[#allocation3 + $0x4] sm:$0x1] %v432
    %v434 = vld [vmem:[#allocation2 + $0x9] ss:$0 sm:$0xff]
    %435 = vst [vmem:[#allocation3 + $0xc] sm:$0x1] %v434
    %v436 = vld [vmem:[#allocation2 + $0xa] ss:$0 sm:$0xff]
    %437 = vst [vmem:[#allocation3 + $0x14] sm:$0x1] %v436
    %v438 = vld [vmem:[#allocation2 + $0xb] ss:$0 sm:$0xff]
    %439 = vst [vmem:[#allocation3 + $0x1c] sm:$0x1] %v438
    %v440 = vld [vmem:[#allocation2 + $0x18] ss:$0 sm:$0xff]
    %441 = vst [vmem:[#allocation3 + $0x5] sm:$0x1] %v440
    %v442 = vld [vmem:[#allocation2 + $0x19] ss:$0 sm:$0xff]
    %443 = vst [vmem:[#allocation3 + $0xd] sm:$0x1] %v442
    %v444 = vld [vmem:[#allocation2 + $0x1a] ss:$0 sm:$0xff]
    %445 = vst [vmem:[#allocation3 + $0x15] sm:$0x1] %v444
    %v446 = vld [vmem:[#allocation2 + $0x1b] ss:$0 sm:$0xff]
    %447 = vst [vmem:[#allocation3 + $0x1d] sm:$0x1] %v446
    %v448 = vld [vmem:[#allocation2 + $0x2] ss:$0 sm:$0xff]
    %449 = vst [vmem:[#allocation3 + $0x6] sm:$0x1] %v448
    %v450 = vld [vmem:[#allocation2 + $0x3] ss:$0 sm:$0xff]
    %451 = vst [vmem:[#allocation3 + $0xe] sm:$0x1] %v450
    %v452 = vld [vmem:[#allocation2 + $0x4] ss:$0 sm:$0xff]
    %453 = vst [vmem:[#allocation3 + $0x16] sm:$0x1] %v452
    %v454 = vld [vmem:[#allocation2 + $0x5] ss:$0 sm:$0xff]
    %455 = vst [vmem:[#allocation3 + $0x1e] sm:$0x1] %v454
    %v456 = vld [vmem:[#allocation2 + $0x12] ss:$0 sm:$0xff]
    %457 = vst [vmem:[#allocation3 + $0x7] sm:$0x1] %v456
    %v458 = vld [vmem:[#allocation2 + $0x13] ss:$0 sm:$0xff]
    %459 = vst [vmem:[#allocation3 + $0xf] sm:$0x1] %v458
    %v460 = vld [vmem:[#allocation2 + $0x14] ss:$0 sm:$0xff]
    %461 = vst [vmem:[#allocation3 + $0x17] sm:$0x1] %v460
    %v462 = vld [vmem:[#allocation2 + $0x15] ss:$0 sm:$0xff]
    %463 = vst [vmem:[#allocation3 + $0x1f] sm:$0x1] %v462
    %v464 = vld [vmem:[#allocation2 + $0x2] ss:$0 sm:$0xff]
    %v465 = vld [vmem:[#allocation2 + $0xa] ss:$0 sm:$0xff]
    %468 = vrot.lane.b32.xlu0 %v464, 64
    %v469 = vpop.permute.xlu0 %468
    %470 = vrot.lane.b32.xlu0 %v465, 64
    %v471 = vpop.permute.xlu0 %470
    %v472 = vsel %vm351, %v469, %v471
    %474 = vst [vmem:[#allocation3 + $0x20] sm:$0x1] %v472
    %v475 = vld [vmem:[#allocation2 + $0x3] ss:$0 sm:$0xff]
    %v476 = vld [vmem:[#allocation2 + $0xb] ss:$0 sm:$0xff]
    %479 = vrot.lane.b32.xlu0 %v475, 64
    %v480 = vpop.permute.xlu0 %479
    %481 = vrot.lane.b32.xlu0 %v476, 64
    %v482 = vpop.permute.xlu0 %481
    %v483 = vsel %vm351, %v480, %v482
    %485 = vst [vmem:[#allocation3 + $0x28] sm:$0x1] %v483
    %v486 = vld [vmem:[#allocation2 + $0x4] ss:$0 sm:$0xff]
    %v487 = vld [vmem:[#allocation2 + $0xc] ss:$0 sm:$0xff]
    %490 = vrot.lane.b32.xlu0 %v486, 64
    %v491 = vpop.permute.xlu0 %490
    %492 = vrot.lane.b32.xlu0 %v487, 64
    %v493 = vpop.permute.xlu0 %492
    %v494 = vsel %vm351, %v491, %v493
    %496 = vst [vmem:[#allocation3 + $0x30] sm:$0x1] %v494
    %v497 = vld [vmem:[#allocation2 + $0x5] ss:$0 sm:$0xff]
    %v498 = vld [vmem:[#allocation2 + $0xd] ss:$0 sm:$0xff]
    %501 = vrot.lane.b32.xlu0 %v497, 64
    %v502 = vpop.permute.xlu0 %501
    %503 = vrot.lane.b32.xlu0 %v498, 64
    %v504 = vpop.permute.xlu0 %503
    %v505 = vsel %vm351, %v502, %v504
    %507 = vst [vmem:[#allocation3 + $0x38] sm:$0x1] %v505
    %v508 = vld [vmem:[#allocation2 + $0x12] ss:$0 sm:$0xff]
    %v509 = vld [vmem:[#allocation2 + $0x1a] ss:$0 sm:$0xff]
    %512 = vrot.lane.b32.xlu0 %v508, 64
    %v513 = vpop.permute.xlu0 %512
    %514 = vrot.lane.b32.xlu0 %v509, 64
    %v515 = vpop.permute.xlu0 %514
    %v516 = vsel %vm351, %v513, %v515
    %518 = vst [vmem:[#allocation3 + $0x21] sm:$0x1] %v516
    %v519 = vld [vmem:[#allocation2 + $0x13] ss:$0 sm:$0xff]
    %v520 = vld [vmem:[#allocation2 + $0x1b] ss:$0 sm:$0xff]
    %523 = vrot.lane.b32.xlu0 %v519, 64
    %v524 = vpop.permute.xlu0 %523
    %525 = vrot.lane.b32.xlu0 %v520, 64
    %v526 = vpop.permute.xlu0 %525
    %v527 = vsel %vm351, %v524, %v526
    %529 = vst [vmem:[#allocation3 + $0x29] sm:$0x1] %v527
    %v530 = vld [vmem:[#allocation2 + $0x14] ss:$0 sm:$0xff]
    %v531 = vld [vmem:[#allocation2 + $0x1c] ss:$0 sm:$0xff]
    %534 = vrot.lane.b32.xlu0 %v530, 64
    %v535 = vpop.permute.xlu0 %534
    %536 = vrot.lane.b32.xlu0 %v531, 64
    %v537 = vpop.permute.xlu0 %536
    %v538 = vsel %vm351, %v535, %v537
    %540 = vst [vmem:[#allocation3 + $0x31] sm:$0x1] %v538
    %v541 = vld [vmem:[#allocation2 + $0x15] ss:$0 sm:$0xff]
    %v542 = vld [vmem:[#allocation2 + $0x1d] ss:$0 sm:$0xff]
    %545 = vrot.lane.b32.xlu0 %v541, 64
    %v546 = vpop.permute.xlu0 %545
    %547 = vrot.lane.b32.xlu0 %v542, 64
    %v548 = vpop.permute.xlu0 %547
    %v549 = vsel %vm351, %v546, %v548
    %551 = vst [vmem:[#allocation3 + $0x39] sm:$0x1] %v549
    %v552 = vld [vmem:[#allocation2 + $0xa] ss:$0 sm:$0xff]
    %553 = vst [vmem:[#allocation3 + $0x22] sm:$0x1] %v552
    %v554 = vld [vmem:[#allocation2 + $0xb] ss:$0 sm:$0xff]
    %555 = vst [vmem:[#allocation3 + $0x2a] sm:$0x1] %v554
    %v556 = vld [vmem:[#allocation2 + $0xc] ss:$0 sm:$0xff]
    %557 = vst [vmem:[#allocation3 + $0x32] sm:$0x1] %v556
    %v558 = vld [vmem:[#allocation2 + $0xd] ss:$0 sm:$0xff]
    %559 = vst [vmem:[#allocation3 + $0x3a] sm:$0x1] %v558
    %v560 = vld [vmem:[#allocation2 + $0x1a] ss:$0 sm:$0xff]
    %561 = vst [vmem:[#allocation3 + $0x23] sm:$0x1] %v560
    %v562 = vld [vmem:[#allocation2 + $0x1b] ss:$0 sm:$0xff]
    %563 = vst [vmem:[#allocation3 + $0x2b] sm:$0x1] %v562
    %v564 = vld [vmem:[#allocation2 + $0x1c] ss:$0 sm:$0xff]
    %565 = vst [vmem:[#allocation3 + $0x33] sm:$0x1] %v564
    %v566 = vld [vmem:[#allocation2 + $0x1d] ss:$0 sm:$0xff]
    %567 = vst [vmem:[#allocation3 + $0x3b] sm:$0x1] %v566
    %v568 = vld [vmem:[#allocation2 + $0x4] ss:$0 sm:$0xff]
    %569 = vst [vmem:[#allocation3 + $0x24] sm:$0x1] %v568
    %v570 = vld [vmem:[#allocation2 + $0x5] ss:$0 sm:$0xff]
    %571 = vst [vmem:[#allocation3 + $0x2c] sm:$0x1] %v570
    %v572 = vld [vmem:[#allocation2 + $0x6] ss:$0 sm:$0xff]
    %573 = vst [vmem:[#allocation3 + $0x34] sm:$0x1] %v572
    %v574 = vld [vmem:[#allocation2 + $0x7] ss:$0 sm:$0xff]
    %575 = vst [vmem:[#allocation3 + $0x3c] sm:$0x1] %v574
    %v576 = vld [vmem:[#allocation2 + $0x14] ss:$0 sm:$0xff]
    %577 = vst [vmem:[#allocation3 + $0x25] sm:$0x1] %v576
    %v578 = vld [vmem:[#allocation2 + $0x15] ss:$0 sm:$0xff]
    %579 = vst [vmem:[#allocation3 + $0x2d] sm:$0x1] %v578
    %v580 = vld [vmem:[#allocation2 + $0x16] ss:$0 sm:$0xff]
    %581 = vst [vmem:[#allocation3 + $0x35] sm:$0x1] %v580
    %v582 = vld [vmem:[#allocation2 + $0x17] ss:$0 sm:$0xff]
    %583 = vst [vmem:[#allocation3 + $0x3d] sm:$0x1] %v582
    %v584 = vld [vmem:[#allocation2 + $0x4] ss:$0 sm:$0xff]
    %v585 = vld [vmem:[#allocation2 + $0xc] ss:$0 sm:$0xff]
    %588 = vrot.lane.b32.xlu0 %v584, 64
    %v589 = vpop.permute.xlu0 %588
    %590 = vrot.lane.b32.xlu0 %v585, 64
    %v591 = vpop.permute.xlu0 %590
    %v592 = vsel %vm351, %v589, %v591
    %594 = vst [vmem:[#allocation3 + $0x26] sm:$0x1] %v592
    %v595 = vld [vmem:[#allocation2 + $0x5] ss:$0 sm:$0xff]
    %v596 = vld [vmem:[#allocation2 + $0xd] ss:$0 sm:$0xff]
    %599 = vrot.lane.b32.xlu0 %v595, 64
    %v600 = vpop.permute.xlu0 %599
    %601 = vrot.lane.b32.xlu0 %v596, 64
    %v602 = vpop.permute.xlu0 %601
    %v603 = vsel %vm351, %v600, %v602
    %605 = vst [vmem:[#allocation3 + $0x2e] sm:$0x1] %v603
    %v606 = vld [vmem:[#allocation2 + $0x6] ss:$0 sm:$0xff]
    %v607 = vld [vmem:[#allocation2 + $0xe] ss:$0 sm:$0xff]
    %610 = vrot.lane.b32.xlu0 %v606, 64
    %v611 = vpop.permute.xlu0 %610
    %612 = vrot.lane.b32.xlu0 %v607, 64
    %v613 = vpop.permute.xlu0 %612
    %v614 = vsel %vm351, %v611, %v613
    %616 = vst [vmem:[#allocation3 + $0x36] sm:$0x1] %v614
    %v617 = vld [vmem:[#allocation2 + $0x7] ss:$0 sm:$0xff]
    %v618 = vld [vmem:[#allocation2 + $0xf] ss:$0 sm:$0xff]
    %621 = vrot.lane.b32.xlu0 %v617, 64
    %v622 = vpop.permute.xlu0 %621
    %623 = vrot.lane.b32.xlu0 %v618, 64
    %v624 = vpop.permute.xlu0 %623
    %v625 = vsel %vm351, %v622, %v624
    %627 = vst [vmem:[#allocation3 + $0x3e] sm:$0x1] %v625
    %v628 = vld [vmem:[#allocation2 + $0x14] ss:$0 sm:$0xff]
    %v629 = vld [vmem:[#allocation2 + $0x1c] ss:$0 sm:$0xff]
    %632 = vrot.lane.b32.xlu0 %v628, 64
    %v633 = vpop.permute.xlu0 %632
    %634 = vrot.lane.b32.xlu0 %v629, 64
    %v635 = vpop.permute.xlu0 %634
    %v636 = vsel %vm351, %v633, %v635
    %638 = vst [vmem:[#allocation3 + $0x27] sm:$0x1] %v636
    %v639 = vld [vmem:[#allocation2 + $0x15] ss:$0 sm:$0xff]
    %v640 = vld [vmem:[#allocation2 + $0x1d] ss:$0 sm:$0xff]
    %643 = vrot.lane.b32.xlu0 %v639, 64
    %v644 = vpop.permute.xlu0 %643
    %645 = vrot.lane.b32.xlu0 %v640, 64
    %v646 = vpop.permute.xlu0 %645
    %v647 = vsel %vm351, %v644, %v646
    %649 = vst [vmem:[#allocation3 + $0x2f] sm:$0x1] %v647
    %v650 = vld [vmem:[#allocation2 + $0x16] ss:$0 sm:$0xff]
    %v651 = vld [vmem:[#allocation2 + $0x1e] ss:$0 sm:$0xff]
    %654 = vrot.lane.b32.xlu0 %v650, 64
    %v655 = vpop.permute.xlu0 %654
    %656 = vrot.lane.b32.xlu0 %v651, 64
    %v657 = vpop.permute.xlu0 %656
    %v658 = vsel %vm351, %v655, %v657
    %660 = vst [vmem:[#allocation3 + $0x37] sm:$0x1] %v658
    %v661 = vld [vmem:[#allocation2 + $0x17] ss:$0 sm:$0xff]
    %v662 = vld [vmem:[#allocation2 + $0x1f] ss:$0 sm:$0xff]
    %665 = vrot.lane.b32.xlu0 %v661, 64
    %v666 = vpop.permute.xlu0 %665
    %667 = vrot.lane.b32.xlu0 %v662, 64
    %v668 = vpop.permute.xlu0 %667
    %v669 = vsel %vm351, %v666, %v668
    %671 = vst [vmem:[#allocation3 + $0x3f] sm:$0x1] %v669
    %v672 = vld [vmem:[#allocation2 + $0xc] ss:$0 sm:$0xff]
    %673 = vst [vmem:[#allocation3 + $0x40] sm:$0x1] %v672
    %v674 = vld [vmem:[#allocation2 + $0xd] ss:$0 sm:$0xff]
    %675 = vst [vmem:[#allocation3 + $0x48] sm:$0x1] %v674
    %v676 = vld [vmem:[#allocation2 + $0xe] ss:$0 sm:$0xff]
    %677 = vst [vmem:[#allocation3 + $0x50] sm:$0x1] %v676
    %v678 = vld [vmem:[#allocation2 + $0xf] ss:$0 sm:$0xff]
    %679 = vst [vmem:[#allocation3 + $0x58] sm:$0x1] %v678
    %v680 = vld [vmem:[#allocation2 + $0x1c] ss:$0 sm:$0xff]
    %681 = vst [vmem:[#allocation3 + $0x41] sm:$0x1] %v680
    %v682 = vld [vmem:[#allocation2 + $0x1d] ss:$0 sm:$0xff]
    %683 = vst [vmem:[#allocation3 + $0x49] sm:$0x1] %v682
    %v684 = vld [vmem:[#allocation2 + $0x1e] ss:$0 sm:$0xff]
    %685 = vst [vmem:[#allocation3 + $0x51] sm:$0x1] %v684
    %v686 = vld [vmem:[#allocation2 + $0x1f] ss:$0 sm:$0xff]
    %687 = vst [vmem:[#allocation3 + $0x59] sm:$0x1] %v686
    %v688 = vld [vmem:[#allocation3] sm:$0xff]
    %v689 = vld [vmem:[#allocation3 + $0x8] sm:$0xff]
    %v690 = vld [vmem:[#allocation3 + $0x10] sm:$0xff]
    %v691 = vld [vmem:[#allocation3 + $0x18] sm:$0xff]
    %v692 = vld [vmem:[#allocation3 + $0x20] sm:$0xff]
    %v693 = vld [vmem:[#allocation3 + $0x28] sm:$0xff]
    %v694 = vld [vmem:[#allocation3 + $0x30] sm:$0xff]
    %v695 = vld [vmem:[#allocation3 + $0x38] sm:$0xff]
    %v696 = vld [vmem:[#allocation3 + $0x40] sm:$0x3]
    %v697 = vld [vmem:[#allocation3 + $0x48] sm:$0x3]
    %v698 = vld [vmem:[#allocation3 + $0x50] sm:$0x3]
    %v699 = vld [vmem:[#allocation3 + $0x58] sm:$0x3]
    %v700 = vld [vmem:[%s3] sm:$0xff]
    %v701 = vld [vmem:[%s3 + $0x8] sm:$0xff]
    %v702 = vld [vmem:[%s3 + $0x10] sm:$0xff]
    %v703 = vld [vmem:[%s3 + $0x18] sm:$0xff]
    %v704 = vld [vmem:[%s3 + $0x20] sm:$0xff]
    %v705 = vld [vmem:[%s3 + $0x28] sm:$0xff]
    %v706 = vld [vmem:[%s3 + $0x30] sm:$0xff]
    %v707 = vld [vmem:[%s3 + $0x38] sm:$0xff]
    %v708 = vld [vmem:[%s3 + $0x40] sm:$0xff]
    %v709 = vld [vmem:[%s3 + $0x48] sm:$0xff]
    %v710 = vld [vmem:[%s3 + $0x50] sm:$0xff]
    %v711 = vld [vmem:[%s3 + $0x58] sm:$0xff]
    %v712 = vld [vmem:[%s3 + $0x60] sm:$0xff]
    %v713 = vld [vmem:[%s3 + $0x68] sm:$0xff]
    %v714 = vld [vmem:[%s3 + $0x70] sm:$0xff]
    %v715 = vld [vmem:[%s3 + $0x78] sm:$0xff]
    %v716 = vld [vmem:[%s3 + $0x80] sm:$0xff]
    %v717 = vld [vmem:[%s3 + $0x88] sm:$0xff]
    %v718 = vld [vmem:[%s3 + $0x90] sm:$0xff]
    %v719 = vld [vmem:[%s3 + $0x98] sm:$0xff]
    %v720 = vld [vmem:[%s3 + $0xa0] sm:$0xff]
    %v721 = vld [vmem:[%s3 + $0xa8] sm:$0xff]
    %v722 = vld [vmem:[%s3 + $0xb0] sm:$0xff]
    %v723 = vld [vmem:[%s3 + $0xb8] sm:$0xff]
    %v724 = vld [vmem:[%s3 + $0xc0] sm:$0xff]
    %v725 = vld [vmem:[%s3 + $0xc8] sm:$0xff]
    %v726 = vld [vmem:[%s3 + $0xd0] sm:$0xff]
    %v727 = vld [vmem:[%s3 + $0xd8] sm:$0xff]
    %v728 = vld [vmem:[%s3 + $0xe0] sm:$0xff]
    %v729 = vld [vmem:[%s3 + $0xe8] sm:$0xff]
    %v730 = vld [vmem:[%s3 + $0xf0] sm:$0xff]
    %v731 = vld [vmem:[%s3 + $0xf8] sm:$0xff]
    %v732 = vld [vmem:[%s3 + $0x100] sm:$0xff]
    %v733 = vld [vmem:[%s3 + $0x108] sm:$0xff]
    %v734 = vld [vmem:[%s3 + $0x110] sm:$0xff]
    %v735 = vld [vmem:[%s3 + $0x118] sm:$0xff]
    %v736 = vld [vmem:[%s3 + $0x120] sm:$0xff]
    %v737 = vld [vmem:[%s3 + $0x128] sm:$0xff]
    %v738 = vld [vmem:[%s3 + $0x130] sm:$0xff]
    %v739 = vld [vmem:[%s3 + $0x138] sm:$0xff]
    %v740 = vld [vmem:[%s3 + $0x140] sm:$0xff]
    %v741 = vld [vmem:[%s3 + $0x148] sm:$0xff]
    %v742 = vld [vmem:[%s3 + $0x150] sm:$0xff]
    %v743 = vld [vmem:[%s3 + $0x158] sm:$0xff]
    %v744 = vld [vmem:[%s3 + $0x160] sm:$0xff]
    %v745 = vld [vmem:[%s3 + $0x168] sm:$0xff]
    %v746 = vld [vmem:[%s3 + $0x170] sm:$0xff]
    %v747 = vld [vmem:[%s3 + $0x178] sm:$0xff]
    %v748 = vld [vmem:[%s3 + $0x180] sm:$0xff]
    %v749 = vld [vmem:[%s3 + $0x188] sm:$0xff]
    %v750 = vld [vmem:[%s3 + $0x190] sm:$0xff]
    %v751 = vld [vmem:[%s3 + $0x198] sm:$0xff]
    %v752 = vld [vmem:[%s3 + $0x1a0] sm:$0xff]
    %v753 = vld [vmem:[%s3 + $0x1a8] sm:$0xff]
    %v754 = vld [vmem:[%s3 + $0x1b0] sm:$0xff]
    %v755 = vld [vmem:[%s3 + $0x1b8] sm:$0xff]
    %v756 = vld [vmem:[%s3 + $0x1c0] sm:$0xff]
    %v757 = vld [vmem:[%s3 + $0x1c8] sm:$0xff]
    %v758 = vld [vmem:[%s3 + $0x1d0] sm:$0xff]
    %v759 = vld [vmem:[%s3 + $0x1d8] sm:$0xff]
    %v760 = vld [vmem:[%s3 + $0x1e0] sm:$0xff]
    %v761 = vld [vmem:[%s3 + $0x1e8] sm:$0xff]
    %v762 = vld [vmem:[%s3 + $0x1f0] sm:$0xff]
    %v763 = vld [vmem:[%s3 + $0x1f8] sm:$0xff]
    %v764 = vld [vmem:[%s4] sm:$0x1]
    %v766 = vlaneseq
    %v767 = vshrl.u32 %v766, 7
    %v768 = vsub.s32 0, %v767
    %v769 = vrot.slane %v764, %v768
    %771 = vmatprep.subr.mxu0 0.0
    %772 = vmatpush1.msra.mxu0 %v700
    %773 = vmatprep.subr.mxu0 0.0
    %774 = vmatpush1.msra.mxu0 %v701
    %775 = vmatprep.subr.mxu0 0.0
    %776 = vmatpush1.msra.mxu0 %v702
    %777 = vmatprep.subr.mxu0 0.0
    %778 = vmatpush1.msra.mxu0 %v703
    %779 = vmatprep.subr.mxu0 0.0
    %780 = vmatpush1.msra.mxu0 %v704
    %781 = vmatprep.subr.mxu0 0.0
    %782 = vmatpush1.msra.mxu0 %v705
    %783 = vmatprep.subr.mxu0 0.0
    %784 = vmatpush1.msra.mxu0 %v706
    %785 = vmatprep.subr.mxu0 0.0
    %786 = vmatpush1.msra.mxu0 %v707
    %787 = vmatprep.subr.mxu0 0.0
    %788 = vmatpush1.msra.mxu0 %v708
    %789 = vmatprep.subr.mxu0 0.0
    %790 = vmatpush1.msra.mxu0 %v709
    %791 = vmatprep.subr.mxu0 0.0
    %792 = vmatpush1.msra.mxu0 %v710
    %793 = vmatprep.subr.mxu0 0.0
    %794 = vmatpush1.msra.mxu0 %v711
    %795 = vmatprep.subr.mxu0 0.0
    %796 = vmatpush1.msra.mxu0 %v712
    %797 = vmatprep.subr.mxu0 0.0
    %798 = vmatpush1.msra.mxu0 %v713
    %799 = vmatprep.subr.mxu0 0.0
    %800 = vmatpush1.msra.mxu0 %v714
    %801 = vmatprep.subr.mxu0 0.0
    %802 = vmatpush1.msra.mxu0 %v715
    %803 = vmatprep.subr.mxu0 0.0
    %804 = vmatpush1.msra.mxu0 %v716
    %805 = vmatprep.subr.mxu0 0.0
    %806 = vmatpush1.msra.mxu0 %v717
    %807 = vmatprep.subr.mxu0 0.0
    %808 = vmatpush1.msra.mxu0 %v718
    %809 = vmatprep.subr.mxu0 0.0
    %810 = vmatpush1.msra.mxu0 %v719
    %811 = vmatprep.subr.mxu0 0.0
    %812 = vmatpush1.msra.mxu0 %v720
    %813 = vmatprep.subr.mxu0 0.0
    %814 = vmatpush1.msra.mxu0 %v721
    %815 = vmatprep.subr.mxu0 0.0
    %816 = vmatpush1.msra.mxu0 %v722
    %817 = vmatprep.subr.mxu0 0.0
    %818 = vmatpush1.msra.mxu0 %v723
    %819 = vmatprep.subr.mxu0 0.0
    %820 = vmatpush1.msra.mxu0 %v724
    %821 = vmatprep.subr.mxu0 0.0
    %822 = vmatpush1.msra.mxu0 %v725
    %823 = vmatprep.subr.mxu0 0.0
    %824 = vmatpush1.msra.mxu0 %v726
    %825 = vmatprep.subr.mxu0 0.0
    %826 = vmatpush1.msra.mxu0 %v727
    %827 = vmatprep.subr.mxu0 0.0
    %828 = vmatpush1.msra.mxu0 %v728
    %829 = vmatprep.subr.mxu0 0.0
    %830 = vmatpush1.msra.mxu0 %v729
    %831 = vmatprep.subr.mxu0 0.0
    %832 = vmatpush1.msra.mxu0 %v730
    %833 = vmatprep.subr.mxu0 0.0
    %834 = vmatpush1.msra.mxu0 %v731
    %835 = vmatprep.mubr.f32.mxu0 %v689
    %836 = vmatmul.mubr.f32.gmra.mrb[0].mxu0 %v688
    %v837 = vpop.f32.mrb[0].mxu0
    %v838 = vadd.f32 %v769, %v837
    %v839 = vpop.f32.mrb[0].mxu0
    %840 = vmatprep.mubr.f32.mxu0 %v693
    %841 = vmatmul.mubr.f32.gmra.mrb[0].mxu0 %v692
    %v842 = vpop.f32.mrb[0].mxu0
    %v843 = vadd.f32 %v769, %v842
    %v844 = vpop.f32.mrb[0].mxu0
    %845 = vmatprep.mubr.f32.mxu0 %v697
    %846 = vmatmul.mubr.f32.gmra.mrb[0].mxu0 %v696
    %v847 = vpop.f32.mrb[0].mxu0
    %v848 = vadd.f32 %v769, %v847
    %v849 = vpop.f32.mrb[0].mxu0
    %850 = vdwg.mxu0
    %851 = vmatprep.subr.mxu0 0.0
    %852 = vmatpush1.msra.mxu0 %v732
    %853 = vmatprep.subr.mxu0 0.0
    %854 = vmatpush1.msra.mxu0 %v733
    %855 = vmatprep.subr.mxu0 0.0
    %856 = vmatpush1.msra.mxu0 %v734
    %857 = vmatprep.subr.mxu0 0.0
    %858 = vmatpush1.msra.mxu0 %v735
    %859 = vmatprep.subr.mxu0 0.0
    %860 = vmatpush1.msra.mxu0 %v736
    %861 = vmatprep.subr.mxu0 0.0
    %862 = vmatpush1.msra.mxu0 %v737
    %863 = vmatprep.subr.mxu0 0.0
    %864 = vmatpush1.msra.mxu0 %v738
    %865 = vmatprep.subr.mxu0 0.0
    %866 = vmatpush1.msra.mxu0 %v739
    %867 = vmatprep.subr.mxu0 0.0
    %868 = vmatpush1.msra.mxu0 %v740
    %869 = vmatprep.subr.mxu0 0.0
    %870 = vmatpush1.msra.mxu0 %v741
    %871 = vmatprep.subr.mxu0 0.0
    %872 = vmatpush1.msra.mxu0 %v742
    %873 = vmatprep.subr.mxu0 0.0
    %874 = vmatpush1.msra.mxu0 %v743
    %875 = vmatprep.subr.mxu0 0.0
    %876 = vmatpush1.msra.mxu0 %v744
    %877 = vmatprep.subr.mxu0 0.0
    %878 = vmatpush1.msra.mxu0 %v745
    %879 = vmatprep.subr.mxu0 0.0
    %880 = vmatpush1.msra.mxu0 %v746
    %881 = vmatprep.subr.mxu0 0.0
    %882 = vmatpush1.msra.mxu0 %v747
    %883 = vmatprep.subr.mxu0 0.0
    %884 = vmatpush1.msra.mxu0 %v748
    %885 = vmatprep.subr.mxu0 0.0
    %886 = vmatpush1.msra.mxu0 %v749
    %887 = vmatprep.subr.mxu0 0.0
    %888 = vmatpush1.msra.mxu0 %v750
    %889 = vmatprep.subr.mxu0 0.0
    %890 = vmatpush1.msra.mxu0 %v751
    %891 = vmatprep.subr.mxu0 0.0
    %892 = vmatpush1.msra.mxu0 %v752
    %893 = vmatprep.subr.mxu0 0.0
    %894 = vmatpush1.msra.mxu0 %v753
    %895 = vmatprep.subr.mxu0 0.0
    %896 = vmatpush1.msra.mxu0 %v754
    %897 = vmatprep.subr.mxu0 0.0
    %898 = vmatpush1.msra.mxu0 %v755
    %899 = vmatprep.subr.mxu0 0.0
    %900 = vmatpush1.msra.mxu0 %v756
    %901 = vmatprep.subr.mxu0 0.0
    %902 = vmatpush1.msra.mxu0 %v757
    %903 = vmatprep.subr.mxu0 0.0
    %904 = vmatpush1.msra.mxu0 %v758
    %905 = vmatprep.subr.mxu0 0.0
    %906 = vmatpush1.msra.mxu0 %v759
    %907 = vmatprep.subr.mxu0 0.0
    %908 = vmatpush1.msra.mxu0 %v760
    %909 = vmatprep.subr.mxu0 0.0
    %910 = vmatpush1.msra.mxu0 %v761
    %911 = vmatprep.subr.mxu0 0.0
    %912 = vmatpush1.msra.mxu0 %v762
    %913 = vmatprep.subr.mxu0 0.0
    %914 = vmatpush1.msra.mxu0 %v763
    %915 = vmatprep.mubr.f32.mxu0 %v691
    %916 = vmatmul.mubr.f32.gmra.mrb[0].mxu0 %v690
    %v917 = vpop.f32.mrb[0].mxu0
    %v918 = vadd.f32 %v838, %v917
    %v919 = vpop.f32.mrb[0].mxu0
    %920 = vmatprep.mubr.f32.mxu0 %v695
    %921 = vmatmul.mubr.f32.gmra.mrb[0].mxu0 %v694
    %v922 = vpop.f32.mrb[0].mxu0
    %v923 = vadd.f32 %v843, %v922
    %v924 = vpop.f32.mrb[0].mxu0
    %925 = vmatprep.mubr.f32.mxu0 %v699
    %926 = vmatmul.mubr.f32.gmra.mrb[0].mxu0 %v698
    %v927 = vpop.f32.mrb[0].mxu0
    %v928 = vadd.f32 %v848, %v927
    %v929 = vpop.f32.mrb[0].mxu0
    %930 = vdwg.mxu0
    %v931 = vmax.f32 %v918, 0.0
    %v932 = vmax.f32 %v923, 0.0
    %v933 = vmax.f32 %v928, 0.0
    %v934 = vld [vmem:[%s6] sm:$0x1]
    %v936 = vlaneseq
    %v937 = vshrl.u32 %v936, 7
    %v938 = vsub.s32 0, %v937
    %v939 = vrot.slane %v934, %v938
    %v941 = vadd.f32 %v939, 0.0
    %v942 = vld [vmem:[%s5] sm:$0xff]
    %v943 = vld [vmem:[%s5 + $0x8] sm:$0xff]
    %v944 = vld [vmem:[%s5 + $0x10] sm:$0xff]
    %v945 = vld [vmem:[%s5 + $0x18] sm:$0xff]
    %v946 = vld [vmem:[%s5 + $0x20] sm:$0xff]
    %v947 = vld [vmem:[%s5 + $0x28] sm:$0xff]
    %v948 = vld [vmem:[%s5 + $0x30] sm:$0xff]
    %v949 = vld [vmem:[%s5 + $0x38] sm:$0xff]
    %v951 = vsel %vm351, %v931, 0
    %953 = vmatprep.subr.mxu0 0.0
    %954 = vmatpush1.msra.mxu0 %v942
    %955 = vmatprep.subr.mxu0 0.0
    %956 = vmatpush1.msra.mxu0 %v943
    %957 = vmatprep.subr.mxu0 0.0
    %958 = vmatpush1.msra.mxu0 %v944
    %959 = vmatprep.subr.mxu0 0.0
    %960 = vmatpush1.msra.mxu0 %v945
    %961 = vmatprep.subr.mxu0 0.0
    %962 = vmatpush1.msra.mxu0 %v946
    %963 = vmatprep.subr.mxu0 0.0
    %964 = vmatpush1.msra.mxu0 %v947
    %965 = vmatprep.subr.mxu0 0.0
    %966 = vmatpush1.msra.mxu0 %v948
    %967 = vmatprep.subr.mxu0 0.0
    %968 = vmatpush1.msra.mxu0 %v949
    %969 = vmatprep.subr.mxu0 0.0
    %970 = vmatpush1.msra.mxu0 0.0
    %971 = vmatprep.subr.mxu0 0.0
    %972 = vmatpush1.msra.mxu0 0.0
    %973 = vmatprep.subr.mxu0 0.0
    %974 = vmatpush1.msra.mxu0 0.0
    %975 = vmatprep.subr.mxu0 0.0
    %976 = vmatpush1.msra.mxu0 0.0
    %977 = vmatprep.subr.mxu0 0.0
    %978 = vmatpush1.msra.mxu0 0.0
    %979 = vmatprep.subr.mxu0 0.0
    %980 = vmatpush1.msra.mxu0 0.0
    %981 = vmatprep.subr.mxu0 0.0
    %982 = vmatpush1.msra.mxu0 0.0
    %983 = vmatprep.subr.mxu0 0.0
    %984 = vmatpush1.msra.mxu0 0.0
    %985 = vmatprep.subr.mxu0 0.0
    %986 = vmatpush1.msra.mxu0 0.0
    %987 = vmatprep.subr.mxu0 0.0
    %988 = vmatpush1.msra.mxu0 0.0
    %989 = vmatprep.subr.mxu0 0.0
    %990 = vmatpush1.msra.mxu0 0.0
    %991 = vmatprep.subr.mxu0 0.0
    %992 = vmatpush1.msra.mxu0 0.0
    %993 = vmatprep.subr.mxu0 0.0
    %994 = vmatpush1.msra.mxu0 0.0
    %995 = vmatprep.subr.mxu0 0.0
    %996 = vmatpush1.msra.mxu0 0.0
    %997 = vmatprep.subr.mxu0 0.0
    %998 = vmatpush1.msra.mxu0 0.0
    %999 = vmatprep.subr.mxu0 0.0
    %1000 = vmatpush1.msra.mxu0 0.0
    %1001 = vmatprep.subr.mxu0 0.0
    %1002 = vmatpush1.msra.mxu0 0.0
    %1003 = vmatprep.subr.mxu0 0.0
    %1004 = vmatpush1.msra.mxu0 0.0
    %1005 = vmatprep.subr.mxu0 0.0
    %1006 = vmatpush1.msra.mxu0 0.0
    %1007 = vmatprep.subr.mxu0 0.0
    %1008 = vmatpush1.msra.mxu0 0.0
    %1009 = vmatprep.subr.mxu0 0.0
    %1010 = vmatpush1.msra.mxu0 0.0
    %1011 = vmatprep.subr.mxu0 0.0
    %1012 = vmatpush1.msra.mxu0 0.0
    %1013 = vmatprep.subr.mxu0 0.0
    %1014 = vmatpush1.msra.mxu0 0.0
    %1015 = vmatprep.subr.mxu0 0.0
    %1016 = vmatpush1.msra.mxu0 0.0
    %1017 = vmatprep.mubr.f32.mxu0 0.0
    %1018 = vmatmul.mubr.f32.gmra.mrb[0].mxu0 %v951
    %v1019 = vpop.f32.mrb[0].mxu0
    %v1020 = vadd.f32 0.0, %v1019
    %v1021 = vpop.f32.mrb[0].mxu0
    %1022 = vdwg.mxu0
    %v1023 = vadd.f32 %v941, %v1020
    %v1024 = vld [vmem:[%s5 + $0x40] sm:$0xff]
    %v1025 = vld [vmem:[%s5 + $0x48] sm:$0xff]
    %v1026 = vld [vmem:[%s5 + $0x50] sm:$0xff]
    %v1027 = vld [vmem:[%s5 + $0x58] sm:$0xff]
    %v1028 = vld [vmem:[%s5 + $0x60] sm:$0xff]
    %v1029 = vld [vmem:[%s5 + $0x68] sm:$0xff]
    %v1030 = vld [vmem:[%s5 + $0x70] sm:$0xff]
    %v1031 = vld [vmem:[%s5 + $0x78] sm:$0xff]
    %v1032 = vrot.slane %v931, 2
    %v1033 = vsel %vm351, %v1032, 0
    %1035 = vmatprep.subr.mxu0 0.0
    %1036 = vmatpush1.msra.mxu0 %v1024
    %1037 = vmatprep.subr.mxu0 0.0
    %1038 = vmatpush1.msra.mxu0 %v1025
    %1039 = vmatprep.subr.mxu0 0.0
    %1040 = vmatpush1.msra.mxu0 %v1026
    %1041 = vmatprep.subr.mxu0 0.0
    %1042 = vmatpush1.msra.mxu0 %v1027
    %1043 = vmatprep.subr.mxu0 0.0
    %1044 = vmatpush1.msra.mxu0 %v1028
    %1045 = vmatprep.subr.mxu0 0.0
    %1046 = vmatpush1.msra.mxu0 %v1029
    %1047 = vmatprep.subr.mxu0 0.0
    %1048 = vmatpush1.msra.mxu0 %v1030
    %1049 = vmatprep.subr.mxu0 0.0
    %1050 = vmatpush1.msra.mxu0 %v1031
    %1051 = vmatprep.subr.mxu0 0.0
    %1052 = vmatpush1.msra.mxu0 0.0
    %1053 = vmatprep.subr.mxu0 0.0
    %1054 = vmatpush1.msra.mxu0 0.0
    %1055 = vmatprep.subr.mxu0 0.0
    %1056 = vmatpush1.msra.mxu0 0.0
    %1057 = vmatprep.subr.mxu0 0.0
    %1058 = vmatpush1.msra.mxu0 0.0
    %1059 = vmatprep.subr.mxu0 0.0
    %1060 = vmatpush1.msra.mxu0 0.0
    %1061 = vmatprep.subr.mxu0 0.0
    %1062 = vmatpush1.msra.mxu0 0.0
    %1063 = vmatprep.subr.mxu0 0.0
    %1064 = vmatpush1.msra.mxu0 0.0
    %1065 = vmatprep.subr.mxu0 0.0
    %1066 = vmatpush1.msra.mxu0 0.0
    %1067 = vmatprep.subr.mxu0 0.0
    %1068 = vmatpush1.msra.mxu0 0.0
    %1069 = vmatprep.subr.mxu0 0.0
    %1070 = vmatpush1.msra.mxu0 0.0
    %1071 = vmatprep.subr.mxu0 0.0
    %1072 = vmatpush1.msra.mxu0 0.0
    %1073 = vmatprep.subr.mxu0 0.0
    %1074 = vmatpush1.msra.mxu0 0.0
    %1075 = vmatprep.subr.mxu0 0.0
    %1076 = vmatpush1.msra.mxu0 0.0
    %1077 = vmatprep.subr.mxu0 0.0
    %1078 = vmatpush1.msra.mxu0 0.0
    %1079 = vmatprep.subr.mxu0 0.0
    %1080 = vmatpush1.msra.mxu0 0.0
    %1081 = vmatprep.subr.mxu0 0.0
    %1082 = vmatpush1.msra.mxu0 0.0
    %1083 = vmatprep.subr.mxu0 0.0
    %1084 = vmatpush1.msra.mxu0 0.0
    %1085 = vmatprep.subr.mxu0 0.0
    %1086 = vmatpush1.msra.mxu0 0.0
    %1087 = vmatprep.subr.mxu0 0.0
    %1088 = vmatpush1.msra.mxu0 0.0
    %1089 = vmatprep.subr.mxu0 0.0
    %1090 = vmatpush1.msra.mxu0 0.0
    %1091 = vmatprep.subr.mxu0 0.0
    %1092 = vmatpush1.msra.mxu0 0.0
    %1093 = vmatprep.subr.mxu0 0.0
    %1094 = vmatpush1.msra.mxu0 0.0
    %1095 = vmatprep.subr.mxu0 0.0
    %1096 = vmatpush1.msra.mxu0 0.0
    %1097 = vmatprep.subr.mxu0 0.0
    %1098 = vmatpush1.msra.mxu0 0.0
    %1099 = vmatprep.mubr.f32.mxu0 0.0
    %1100 = vmatmul.mubr.f32.gmra.mrb[0].mxu0 %v1033
    %v1101 = vpop.f32.mrb[0].mxu0
    %v1102 = vadd.f32 0.0, %v1101
    %v1103 = vpop.f32.mrb[0].mxu0
    %1104 = vdwg.mxu0
    %v1105 = vadd.f32 %v1023, %v1102
    %v1106 = vld [vmem:[%s5 + $0x80] sm:$0xff]
    %v1107 = vld [vmem:[%s5 + $0x88] sm:$0xff]
    %v1108 = vld [vmem:[%s5 + $0x90] sm:$0xff]
    %v1109 = vld [vmem:[%s5 + $0x98] sm:$0xff]
    %v1110 = vld [vmem:[%s5 + $0xa0] sm:$0xff]
    %v1111 = vld [vmem:[%s5 + $0xa8] sm:$0xff]
    %v1112 = vld [vmem:[%s5 + $0xb0] sm:$0xff]
    %v1113 = vld [vmem:[%s5 + $0xb8] sm:$0xff]
    %v1114 = vrot.slane %v931, 4
    %v1115 = vsel %vm351, %v1114, 0
    %1117 = vmatprep.subr.mxu0 0.0
    %1118 = vmatpush1.msra.mxu0 %v1106
    %1119 = vmatprep.subr.mxu0 0.0
    %1120 = vmatpush1.msra.mxu0 %v1107
    %1121 = vmatprep.subr.mxu0 0.0
    %1122 = vmatpush1.msra.mxu0 %v1108
    %1123 = vmatprep.subr.mxu0 0.0
    %1124 = vmatpush1.msra.mxu0 %v1109
    %1125 = vmatprep.subr.mxu0 0.0
    %1126 = vmatpush1.msra.mxu0 %v1110
    %1127 = vmatprep.subr.mxu0 0.0
    %1128 = vmatpush1.msra.mxu0 %v1111
    %1129 = vmatprep.subr.mxu0 0.0
    %1130 = vmatpush1.msra.mxu0 %v1112
    %1131 = vmatprep.subr.mxu0 0.0
    %1132 = vmatpush1.msra.mxu0 %v1113
    %1133 = vmatprep.subr.mxu0 0.0
    %1134 = vmatpush1.msra.mxu0 0.0
    %1135 = vmatprep.subr.mxu0 0.0
    %1136 = vmatpush1.msra.mxu0 0.0
    %1137 = vmatprep.subr.mxu0 0.0
    %1138 = vmatpush1.msra.mxu0 0.0
    %1139 = vmatprep.subr.mxu0 0.0
    %1140 = vmatpush1.msra.mxu0 0.0
    %1141 = vmatprep.subr.mxu0 0.0
    %1142 = vmatpush1.msra.mxu0 0.0
    %1143 = vmatprep.subr.mxu0 0.0
    %1144 = vmatpush1.msra.mxu0 0.0
    %1145 = vmatprep.subr.mxu0 0.0
    %1146 = vmatpush1.msra.mxu0 0.0
    %1147 = vmatprep.subr.mxu0 0.0
    %1148 = vmatpush1.msra.mxu0 0.0
    %1149 = vmatprep.subr.mxu0 0.0
    %1150 = vmatpush1.msra.mxu0 0.0
    %1151 = vmatprep.subr.mxu0 0.0
    %1152 = vmatpush1.msra.mxu0 0.0
    %1153 = vmatprep.subr.mxu0 0.0
    %1154 = vmatpush1.msra.mxu0 0.0
    %1155 = vmatprep.subr.mxu0 0.0
    %1156 = vmatpush1.msra.mxu0 0.0
    %1157 = vmatprep.subr.mxu0 0.0
    %1158 = vmatpush1.msra.mxu0 0.0
    %1159 = vmatprep.subr.mxu0 0.0
    %1160 = vmatpush1.msra.mxu0 0.0
    %1161 = vmatprep.subr.mxu0 0.0
    %1162 = vmatpush1.msra.mxu0 0.0
    %1163 = vmatprep.subr.mxu0 0.0
    %1164 = vmatpush1.msra.mxu0 0.0
    %1165 = vmatprep.subr.mxu0 0.0
    %1166 = vmatpush1.msra.mxu0 0.0
    %1167 = vmatprep.subr.mxu0 0.0
    %1168 = vmatpush1.msra.mxu0 0.0
    %1169 = vmatprep.subr.mxu0 0.0
    %1170 = vmatpush1.msra.mxu0 0.0
    %1171 = vmatprep.subr.mxu0 0.0
    %1172 = vmatpush1.msra.mxu0 0.0
    %1173 = vmatprep.subr.mxu0 0.0
    %1174 = vmatpush1.msra.mxu0 0.0
    %1175 = vmatprep.subr.mxu0 0.0
    %1176 = vmatpush1.msra.mxu0 0.0
    %1177 = vmatprep.subr.mxu0 0.0
    %1178 = vmatpush1.msra.mxu0 0.0
    %1179 = vmatprep.subr.mxu0 0.0
    %1180 = vmatpush1.msra.mxu0 0.0
    %1181 = vmatprep.mubr.f32.mxu0 0.0
    %1182 = vmatmul.mubr.f32.gmra.mrb[0].mxu0 %v1115
    %v1183 = vpop.f32.mrb[0].mxu0
    %v1184 = vadd.f32 0.0, %v1183
    %v1185 = vpop.f32.mrb[0].mxu0
    %1186 = vdwg.mxu0
    %v1187 = vadd.f32 %v1105, %v1184
    %v1188 = vld [vmem:[%s5 + $0xc0] sm:$0xff]
    %v1189 = vld [vmem:[%s5 + $0xc8] sm:$0xff]
    %v1190 = vld [vmem:[%s5 + $0xd0] sm:$0xff]
    %v1191 = vld [vmem:[%s5 + $0xd8] sm:$0xff]
    %v1192 = vld [vmem:[%s5 + $0xe0] sm:$0xff]
    %v1193 = vld [vmem:[%s5 + $0xe8] sm:$0xff]
    %v1194 = vld [vmem:[%s5 + $0xf0] sm:$0xff]
    %v1195 = vld [vmem:[%s5 + $0xf8] sm:$0xff]
    %v1196 = vrot.slane %v931, 6
    %v1197 = vsel %vm351, %v1196, 0
    %1199 = vmatprep.subr.mxu0 0.0
    %1200 = vmatpush1.msra.mxu0 %v1188
    %1201 = vmatprep.subr.mxu0 0.0
    %1202 = vmatpush1.msra.mxu0 %v1189
    %1203 = vmatprep.subr.mxu0 0.0
    %1204 = vmatpush1.msra.mxu0 %v1190
    %1205 = vmatprep.subr.mxu0 0.0
    %1206 = vmatpush1.msra.mxu0 %v1191
    %1207 = vmatprep.subr.mxu0 0.0
    %1208 = vmatpush1.msra.mxu0 %v1192
    %1209 = vmatprep.subr.mxu0 0.0
    %1210 = vmatpush1.msra.mxu0 %v1193
    %1211 = vmatprep.subr.mxu0 0.0
    %1212 = vmatpush1.msra.mxu0 %v1194
    %1213 = vmatprep.subr.mxu0 0.0
    %1214 = vmatpush1.msra.mxu0 %v1195
    %1215 = vmatprep.subr.mxu0 0.0
    %1216 = vmatpush1.msra.mxu0 0.0
    %1217 = vmatprep.subr.mxu0 0.0
    %1218 = vmatpush1.msra.mxu0 0.0
    %1219 = vmatprep.subr.mxu0 0.0
    %1220 = vmatpush1.msra.mxu0 0.0
    %1221 = vmatprep.subr.mxu0 0.0
    %1222 = vmatpush1.msra.mxu0 0.0
    %1223 = vmatprep.subr.mxu0 0.0
    %1224 = vmatpush1.msra.mxu0 0.0
    %1225 = vmatprep.subr.mxu0 0.0
    %1226 = vmatpush1.msra.mxu0 0.0
    %1227 = vmatprep.subr.mxu0 0.0
    %1228 = vmatpush1.msra.mxu0 0.0
    %1229 = vmatprep.subr.mxu0 0.0
    %1230 = vmatpush1.msra.mxu0 0.0
    %1231 = vmatprep.subr.mxu0 0.0
    %1232 = vmatpush1.msra.mxu0 0.0
    %1233 = vmatprep.subr.mxu0 0.0
    %1234 = vmatpush1.msra.mxu0 0.0
    %1235 = vmatprep.subr.mxu0 0.0
    %1236 = vmatpush1.msra.mxu0 0.0
    %1237 = vmatprep.subr.mxu0 0.0
    %1238 = vmatpush1.msra.mxu0 0.0
    %1239 = vmatprep.subr.mxu0 0.0
    %1240 = vmatpush1.msra.mxu0 0.0
    %1241 = vmatprep.subr.mxu0 0.0
    %1242 = vmatpush1.msra.mxu0 0.0
    %1243 = vmatprep.subr.mxu0 0.0
    %1244 = vmatpush1.msra.mxu0 0.0
    %1245 = vmatprep.subr.mxu0 0.0
    %1246 = vmatpush1.msra.mxu0 0.0
    %1247 = vmatprep.subr.mxu0 0.0
    %1248 = vmatpush1.msra.mxu0 0.0
    %1249 = vmatprep.subr.mxu0 0.0
    %1250 = vmatpush1.msra.mxu0 0.0
    %1251 = vmatprep.subr.mxu0 0.0
    %1252 = vmatpush1.msra.mxu0 0.0
    %1253 = vmatprep.subr.mxu0 0.0
    %1254 = vmatpush1.msra.mxu0 0.0
    %1255 = vmatprep.subr.mxu0 0.0
    %1256 = vmatpush1.msra.mxu0 0.0
    %1257 = vmatprep.subr.mxu0 0.0
    %1258 = vmatpush1.msra.mxu0 0.0
    %1259 = vmatprep.subr.mxu0 0.0
    %1260 = vmatpush1.msra.mxu0 0.0
    %1261 = vmatprep.subr.mxu0 0.0
    %1262 = vmatpush1.msra.mxu0 0.0
    %1263 = vmatprep.mubr.f32.mxu0 0.0
    %1264 = vmatmul.mubr.f32.gmra.mrb[0].mxu0 %v1197
    %v1265 = vpop.f32.mrb[0].mxu0
    %v1266 = vadd.f32 0.0, %v1265
    %v1267 = vpop.f32.mrb[0].mxu0
    %1268 = vdwg.mxu0
    %v1269 = vadd.f32 %v1187, %v1266
    %v1270 = vld [vmem:[%s5 + $0x100] sm:$0xff]
    %v1271 = vld [vmem:[%s5 + $0x108] sm:$0xff]
    %v1272 = vld [vmem:[%s5 + $0x110] sm:$0xff]
    %v1273 = vld [vmem:[%s5 + $0x118] sm:$0xff]
    %v1274 = vld [vmem:[%s5 + $0x120] sm:$0xff]
    %v1275 = vld [vmem:[%s5 + $0x128] sm:$0xff]
    %v1276 = vld [vmem:[%s5 + $0x130] sm:$0xff]
    %v1277 = vld [vmem:[%s5 + $0x138] sm:$0xff]
    %v1279 = vsel %vm351, %v932, 0
    %1281 = vmatprep.subr.mxu0 0.0
    %1282 = vmatpush1.msra.mxu0 %v1270
    %1283 = vmatprep.subr.mxu0 0.0
    %1284 = vmatpush1.msra.mxu0 %v1271
    %1285 = vmatprep.subr.mxu0 0.0
    %1286 = vmatpush1.msra.mxu0 %v1272
    %1287 = vmatprep.subr.mxu0 0.0
    %1288 = vmatpush1.msra.mxu0 %v1273
    %1289 = vmatprep.subr.mxu0 0.0
    %1290 = vmatpush1.msra.mxu0 %v1274
    %1291 = vmatprep.subr.mxu0 0.0
    %1292 = vmatpush1.msra.mxu0 %v1275
    %1293 = vmatprep.subr.mxu0 0.0
    %1294 = vmatpush1.msra.mxu0 %v1276
    %1295 = vmatprep.subr.mxu0 0.0
    %1296 = vmatpush1.msra.mxu0 %v1277
    %1297 = vmatprep.subr.mxu0 0.0
    %1298 = vmatpush1.msra.mxu0 0.0
    %1299 = vmatprep.subr.mxu0 0.0
    %1300 = vmatpush1.msra.mxu0 0.0
    %1301 = vmatprep.subr.mxu0 0.0
    %1302 = vmatpush1.msra.mxu0 0.0
    %1303 = vmatprep.subr.mxu0 0.0
    %1304 = vmatpush1.msra.mxu0 0.0
    %1305 = vmatprep.subr.mxu0 0.0
    %1306 = vmatpush1.msra.mxu0 0.0
    %1307 = vmatprep.subr.mxu0 0.0
    %1308 = vmatpush1.msra.mxu0 0.0
    %1309 = vmatprep.subr.mxu0 0.0
    %1310 = vmatpush1.msra.mxu0 0.0
    %1311 = vmatprep.subr.mxu0 0.0
    %1312 = vmatpush1.msra.mxu0 0.0
    %1313 = vmatprep.subr.mxu0 0.0
    %1314 = vmatpush1.msra.mxu0 0.0
    %1315 = vmatprep.subr.mxu0 0.0
    %1316 = vmatpush1.msra.mxu0 0.0
    %1317 = vmatprep.subr.mxu0 0.0
    %1318 = vmatpush1.msra.mxu0 0.0
    %1319 = vmatprep.subr.mxu0 0.0
    %1320 = vmatpush1.msra.mxu0 0.0
    %1321 = vmatprep.subr.mxu0 0.0
    %1322 = vmatpush1.msra.mxu0 0.0
    %1323 = vmatprep.subr.mxu0 0.0
    %1324 = vmatpush1.msra.mxu0 0.0
    %1325 = vmatprep.subr.mxu0 0.0
    %1326 = vmatpush1.msra.mxu0 0.0
    %1327 = vmatprep.subr.mxu0 0.0
    %1328 = vmatpush1.msra.mxu0 0.0
    %1329 = vmatprep.subr.mxu0 0.0
    %1330 = vmatpush1.msra.mxu0 0.0
    %1331 = vmatprep.subr.mxu0 0.0
    %1332 = vmatpush1.msra.mxu0 0.0
    %1333 = vmatprep.subr.mxu0 0.0
    %1334 = vmatpush1.msra.mxu0 0.0
    %1335 = vmatprep.subr.mxu0 0.0
    %1336 = vmatpush1.msra.mxu0 0.0
    %1337 = vmatprep.subr.mxu0 0.0
    %1338 = vmatpush1.msra.mxu0 0.0
    %1339 = vmatprep.subr.mxu0 0.0
    %1340 = vmatpush1.msra.mxu0 0.0
    %1341 = vmatprep.subr.mxu0 0.0
    %1342 = vmatpush1.msra.mxu0 0.0
    %1343 = vmatprep.subr.mxu0 0.0
    %1344 = vmatpush1.msra.mxu0 0.0
    %1345 = vmatprep.mubr.f32.mxu0 0.0
    %1346 = vmatmul.mubr.f32.gmra.mrb[0].mxu0 %v1279
    %v1347 = vpop.f32.mrb[0].mxu0
    %v1348 = vadd.f32 0.0, %v1347
    %v1349 = vpop.f32.mrb[0].mxu0
    %1350 = vdwg.mxu0
    %v1351 = vadd.f32 %v1269, %v1348
    %v1352 = vld [vmem:[%s5 + $0x140] sm:$0xff]
    %v1353 = vld [vmem:[%s5 + $0x148] sm:$0xff]
    %v1354 = vld [vmem:[%s5 + $0x150] sm:$0xff]
    %v1355 = vld [vmem:[%s5 + $0x158] sm:$0xff]
    %v1356 = vld [vmem:[%s5 + $0x160] sm:$0xff]
    %v1357 = vld [vmem:[%s5 + $0x168] sm:$0xff]
    %v1358 = vld [vmem:[%s5 + $0x170] sm:$0xff]
    %v1359 = vld [vmem:[%s5 + $0x178] sm:$0xff]
    %v1360 = vrot.slane %v932, 2
    %v1361 = vsel %vm351, %v1360, 0
    %1363 = vmatprep.subr.mxu0 0.0
    %1364 = vmatpush1.msra.mxu0 %v1352
    %1365 = vmatprep.subr.mxu0 0.0
    %1366 = vmatpush1.msra.mxu0 %v1353
    %1367 = vmatprep.subr.mxu0 0.0
    %1368 = vmatpush1.msra.mxu0 %v1354
    %1369 = vmatprep.subr.mxu0 0.0
    %1370 = vmatpush1.msra.mxu0 %v1355
    %1371 = vmatprep.subr.mxu0 0.0
    %1372 = vmatpush1.msra.mxu0 %v1356
    %1373 = vmatprep.subr.mxu0 0.0
    %1374 = vmatpush1.msra.mxu0 %v1357
    %1375 = vmatprep.subr.mxu0 0.0
    %1376 = vmatpush1.msra.mxu0 %v1358
    %1377 = vmatprep.subr.mxu0 0.0
    %1378 = vmatpush1.msra.mxu0 %v1359
    %1379 = vmatprep.subr.mxu0 0.0
    %1380 = vmatpush1.msra.mxu0 0.0
    %1381 = vmatprep.subr.mxu0 0.0
    %1382 = vmatpush1.msra.mxu0 0.0
    %1383 = vmatprep.subr.mxu0 0.0
    %1384 = vmatpush1.msra.mxu0 0.0
    %1385 = vmatprep.subr.mxu0 0.0
    %1386 = vmatpush1.msra.mxu0 0.0
    %1387 = vmatprep.subr.mxu0 0.0
    %1388 = vmatpush1.msra.mxu0 0.0
    %1389 = vmatprep.subr.mxu0 0.0
    %1390 = vmatpush1.msra.mxu0 0.0
    %1391 = vmatprep.subr.mxu0 0.0
    %1392 = vmatpush1.msra.mxu0 0.0
    %1393 = vmatprep.subr.mxu0 0.0
    %1394 = vmatpush1.msra.mxu0 0.0
    %1395 = vmatprep.subr.mxu0 0.0
    %1396 = vmatpush1.msra.mxu0 0.0
    %1397 = vmatprep.subr.mxu0 0.0
    %1398 = vmatpush1.msra.mxu0 0.0
    %1399 = vmatprep.subr.mxu0 0.0
    %1400 = vmatpush1.msra.mxu0 0.0
    %1401 = vmatprep.subr.mxu0 0.0
    %1402 = vmatpush1.msra.mxu0 0.0
    %1403 = vmatprep.subr.mxu0 0.0
    %1404 = vmatpush1.msra.mxu0 0.0
    %1405 = vmatprep.subr.mxu0 0.0
    %1406 = vmatpush1.msra.mxu0 0.0
    %1407 = vmatprep.subr.mxu0 0.0
    %1408 = vmatpush1.msra.mxu0 0.0
    %1409 = vmatprep.subr.mxu0 0.0
    %1410 = vmatpush1.msra.mxu0 0.0
    %1411 = vmatprep.subr.mxu0 0.0
    %1412 = vmatpush1.msra.mxu0 0.0
    %1413 = vmatprep.subr.mxu0 0.0
    %1414 = vmatpush1.msra.mxu0 0.0
    %1415 = vmatprep.subr.mxu0 0.0
    %1416 = vmatpush1.msra.mxu0 0.0
    %1417 = vmatprep.subr.mxu0 0.0
    %1418 = vmatpush1.msra.mxu0 0.0
    %1419 = vmatprep.subr.mxu0 0.0
    %1420 = vmatpush1.msra.mxu0 0.0
    %1421 = vmatprep.subr.mxu0 0.0
    %1422 = vmatpush1.msra.mxu0 0.0
    %1423 = vmatprep.subr.mxu0 0.0
    %1424 = vmatpush1.msra.mxu0 0.0
    %1425 = vmatprep.subr.mxu0 0.0
    %1426 = vmatpush1.msra.mxu0 0.0
    %1427 = vmatprep.mubr.f32.mxu0 0.0
    %1428 = vmatmul.mubr.f32.gmra.mrb[0].mxu0 %v1361
    %v1429 = vpop.f32.mrb[0].mxu0
    %v1430 = vadd.f32 0.0, %v1429
    %v1431 = vpop.f32.mrb[0].mxu0
    %1432 = vdwg.mxu0
    %v1433 = vadd.f32 %v1351, %v1430
    %v1434 = vld [vmem:[%s5 + $0x180] sm:$0xff]
    %v1435 = vld [vmem:[%s5 + $0x188] sm:$0xff]
    %v1436 = vld [vmem:[%s5 + $0x190] sm:$0xff]
    %v1437 = vld [vmem:[%s5 + $0x198] sm:$0xff]
    %v1438 = vld [vmem:[%s5 + $0x1a0] sm:$0xff]
    %v1439 = vld [vmem:[%s5 + $0x1a8] sm:$0xff]
    %v1440 = vld [vmem:[%s5 + $0x1b0] sm:$0xff]
    %v1441 = vld [vmem:[%s5 + $0x1b8] sm:$0xff]
    %v1442 = vrot.slane %v932, 4
    %v1443 = vsel %vm351, %v1442, 0
    %1445 = vmatprep.subr.mxu0 0.0
    %1446 = vmatpush1.msra.mxu0 %v1434
    %1447 = vmatprep.subr.mxu0 0.0
    %1448 = vmatpush1.msra.mxu0 %v1435
    %1449 = vmatprep.subr.mxu0 0.0
    %1450 = vmatpush1.msra.mxu0 %v1436
    %1451 = vmatprep.subr.mxu0 0.0
    %1452 = vmatpush1.msra.mxu0 %v1437
    %1453 = vmatprep.subr.mxu0 0.0
    %1454 = vmatpush1.msra.mxu0 %v1438
    %1455 = vmatprep.subr.mxu0 0.0
    %1456 = vmatpush1.msra.mxu0 %v1439
    %1457 = vmatprep.subr.mxu0 0.0
    %1458 = vmatpush1.msra.mxu0 %v1440
    %1459 = vmatprep.subr.mxu0 0.0
    %1460 = vmatpush1.msra.mxu0 %v1441
    %1461 = vmatprep.subr.mxu0 0.0
    %1462 = vmatpush1.msra.mxu0 0.0
    %1463 = vmatprep.subr.mxu0 0.0
    %1464 = vmatpush1.msra.mxu0 0.0
    %1465 = vmatprep.subr.mxu0 0.0
    %1466 = vmatpush1.msra.mxu0 0.0
    %1467 = vmatprep.subr.mxu0 0.0
    %1468 = vmatpush1.msra.mxu0 0.0
    %1469 = vmatprep.subr.mxu0 0.0
    %1470 = vmatpush1.msra.mxu0 0.0
    %1471 = vmatprep.subr.mxu0 0.0
    %1472 = vmatpush1.msra.mxu0 0.0
    %1473 = vmatprep.subr.mxu0 0.0
    %1474 = vmatpush1.msra.mxu0 0.0
    %1475 = vmatprep.subr.mxu0 0.0
    %1476 = vmatpush1.msra.mxu0 0.0
    %1477 = vmatprep.subr.mxu0 0.0
    %1478 = vmatpush1.msra.mxu0 0.0
    %1479 = vmatprep.subr.mxu0 0.0
    %1480 = vmatpush1.msra.mxu0 0.0
    %1481 = vmatprep.subr.mxu0 0.0
    %1482 = vmatpush1.msra.mxu0 0.0
    %1483 = vmatprep.subr.mxu0 0.0
    %1484 = vmatpush1.msra.mxu0 0.0
    %1485 = vmatprep.subr.mxu0 0.0
    %1486 = vmatpush1.msra.mxu0 0.0
    %1487 = vmatprep.subr.mxu0 0.0
    %1488 = vmatpush1.msra.mxu0 0.0
    %1489 = vmatprep.subr.mxu0 0.0
    %1490 = vmatpush1.msra.mxu0 0.0
    %1491 = vmatprep.subr.mxu0 0.0
    %1492 = vmatpush1.msra.mxu0 0.0
    %1493 = vmatprep.subr.mxu0 0.0
    %1494 = vmatpush1.msra.mxu0 0.0
    %1495 = vmatprep.subr.mxu0 0.0
    %1496 = vmatpush1.msra.mxu0 0.0
    %1497 = vmatprep.subr.mxu0 0.0
    %1498 = vmatpush1.msra.mxu0 0.0
    %1499 = vmatprep.subr.mxu0 0.0
    %1500 = vmatpush1.msra.mxu0 0.0
    %1501 = vmatprep.subr.mxu0 0.0
    %1502 = vmatpush1.msra.mxu0 0.0
    %1503 = vmatprep.subr.mxu0 0.0
    %1504 = vmatpush1.msra.mxu0 0.0
    %1505 = vmatprep.subr.mxu0 0.0
    %1506 = vmatpush1.msra.mxu0 0.0
    %1507 = vmatprep.subr.mxu0 0.0
    %1508 = vmatpush1.msra.mxu0 0.0
    %1509 = vmatprep.mubr.f32.mxu0 0.0
    %1510 = vmatmul.mubr.f32.gmra.mrb[0].mxu0 %v1443
    %v1511 = vpop.f32.mrb[0].mxu0
    %v1512 = vadd.f32 0.0, %v1511
    %v1513 = vpop.f32.mrb[0].mxu0
    %1514 = vdwg.mxu0
    %v1515 = vadd.f32 %v1433, %v1512
    %v1516 = vld [vmem:[%s5 + $0x1c0] sm:$0xff]
    %v1517 = vld [vmem:[%s5 + $0x1c8] sm:$0xff]
    %v1518 = vld [vmem:[%s5 + $0x1d0] sm:$0xff]
    %v1519 = vld [vmem:[%s5 + $0x1d8] sm:$0xff]
    %v1520 = vld [vmem:[%s5 + $0x1e0] sm:$0xff]
    %v1521 = vld [vmem:[%s5 + $0x1e8] sm:$0xff]
    %v1522 = vld [vmem:[%s5 + $0x1f0] sm:$0xff]
    %v1523 = vld [vmem:[%s5 + $0x1f8] sm:$0xff]
    %v1524 = vrot.slane %v932, 6
    %v1525 = vsel %vm351, %v1524, 0
    %1527 = vmatprep.subr.mxu0 0.0
    %1528 = vmatpush1.msra.mxu0 %v1516
    %1529 = vmatprep.subr.mxu0 0.0
    %1530 = vmatpush1.msra.mxu0 %v1517
    %1531 = vmatprep.subr.mxu0 0.0
    %1532 = vmatpush1.msra.mxu0 %v1518
    %1533 = vmatprep.subr.mxu0 0.0
    %1534 = vmatpush1.msra.mxu0 %v1519
    %1535 = vmatprep.subr.mxu0 0.0
    %1536 = vmatpush1.msra.mxu0 %v1520
    %1537 = vmatprep.subr.mxu0 0.0
    %1538 = vmatpush1.msra.mxu0 %v1521
    %1539 = vmatprep.subr.mxu0 0.0
    %1540 = vmatpush1.msra.mxu0 %v1522
    %1541 = vmatprep.subr.mxu0 0.0
    %1542 = vmatpush1.msra.mxu0 %v1523
    %1543 = vmatprep.subr.mxu0 0.0
    %1544 = vmatpush1.msra.mxu0 0.0
    %1545 = vmatprep.subr.mxu0 0.0
    %1546 = vmatpush1.msra.mxu0 0.0
    %1547 = vmatprep.subr.mxu0 0.0
    %1548 = vmatpush1.msra.mxu0 0.0
    %1549 = vmatprep.subr.mxu0 0.0
    %1550 = vmatpush1.msra.mxu0 0.0
    %1551 = vmatprep.subr.mxu0 0.0
    %1552 = vmatpush1.msra.mxu0 0.0
    %1553 = vmatprep.subr.mxu0 0.0
    %1554 = vmatpush1.msra.mxu0 0.0
    %1555 = vmatprep.subr.mxu0 0.0
    %1556 = vmatpush1.msra.mxu0 0.0
    %1557 = vmatprep.subr.mxu0 0.0
    %1558 = vmatpush1.msra.mxu0 0.0
    %1559 = vmatprep.subr.mxu0 0.0
    %1560 = vmatpush1.msra.mxu0 0.0
    %1561 = vmatprep.subr.mxu0 0.0
    %1562 = vmatpush1.msra.mxu0 0.0
    %1563 = vmatprep.subr.mxu0 0.0
    %1564 = vmatpush1.msra.mxu0 0.0
    %1565 = vmatprep.subr.mxu0 0.0
    %1566 = vmatpush1.msra.mxu0 0.0
    %1567 = vmatprep.subr.mxu0 0.0
    %1568 = vmatpush1.msra.mxu0 0.0
    %1569 = vmatprep.subr.mxu0 0.0
    %1570 = vmatpush1.msra.mxu0 0.0
    %1571 = vmatprep.subr.mxu0 0.0
    %1572 = vmatpush1.msra.mxu0 0.0
    %1573 = vmatprep.subr.mxu0 0.0
    %1574 = vmatpush1.msra.mxu0 0.0
    %1575 = vmatprep.subr.mxu0 0.0
    %1576 = vmatpush1.msra.mxu0 0.0
    %1577 = vmatprep.subr.mxu0 0.0
    %1578 = vmatpush1.msra.mxu0 0.0
    %1579 = vmatprep.subr.mxu0 0.0
    %1580 = vmatpush1.msra.mxu0 0.0
    %1581 = vmatprep.subr.mxu0 0.0
    %1582 = vmatpush1.msra.mxu0 0.0
    %1583 = vmatprep.subr.mxu0 0.0
    %1584 = vmatpush1.msra.mxu0 0.0
    %1585 = vmatprep.subr.mxu0 0.0
    %1586 = vmatpush1.msra.mxu0 0.0
    %1587 = vmatprep.subr.mxu0 0.0
    %1588 = vmatpush1.msra.mxu0 0.0
    %1589 = vmatprep.subr.mxu0 0.0
    %1590 = vmatpush1.msra.mxu0 0.0
    %1591 = vmatprep.mubr.f32.mxu0 0.0
    %1592 = vmatmul.mubr.f32.gmra.mrb[0].mxu0 %v1525
    %v1593 = vpop.f32.mrb[0].mxu0
    %v1594 = vadd.f32 0.0, %v1593
    %v1595 = vpop.f32.mrb[0].mxu0
    %1596 = vdwg.mxu0
    %v1597 = vadd.f32 %v1515, %v1594
    %v1598 = vld [vmem:[%s5 + $0x200] sm:$0xff]
    %v1599 = vld [vmem:[%s5 + $0x208] sm:$0xff]
    %v1600 = vld [vmem:[%s5 + $0x210] sm:$0xff]
    %v1601 = vld [vmem:[%s5 + $0x218] sm:$0xff]
    %v1602 = vld [vmem:[%s5 + $0x220] sm:$0xff]
    %v1603 = vld [vmem:[%s5 + $0x228] sm:$0xff]
    %v1604 = vld [vmem:[%s5 + $0x230] sm:$0xff]
    %v1605 = vld [vmem:[%s5 + $0x238] sm:$0xff]
    %v1607 = vsel %vm351, %v933, 0
    %1609 = vmatprep.subr.mxu0 0.0
    %1610 = vmatpush1.msra.mxu0 %v1598
    %1611 = vmatprep.subr.mxu0 0.0
    %1612 = vmatpush1.msra.mxu0 %v1599
    %1613 = vmatprep.subr.mxu0 0.0
    %1614 = vmatpush1.msra.mxu0 %v1600
    %1615 = vmatprep.subr.mxu0 0.0
    %1616 = vmatpush1.msra.mxu0 %v1601
    %1617 = vmatprep.subr.mxu0 0.0
    %1618 = vmatpush1.msra.mxu0 %v1602
    %1619 = vmatprep.subr.mxu0 0.0
    %1620 = vmatpush1.msra.mxu0 %v1603
    %1621 = vmatprep.subr.mxu0 0.0
    %1622 = vmatpush1.msra.mxu0 %v1604
    %1623 = vmatprep.subr.mxu0 0.0
    %1624 = vmatpush1.msra.mxu0 %v1605
    %1625 = vmatprep.subr.mxu0 0.0
    %1626 = vmatpush1.msra.mxu0 0.0
    %1627 = vmatprep.subr.mxu0 0.0
    %1628 = vmatpush1.msra.mxu0 0.0
    %1629 = vmatprep.subr.mxu0 0.0
    %1630 = vmatpush1.msra.mxu0 0.0
    %1631 = vmatprep.subr.mxu0 0.0
    %1632 = vmatpush1.msra.mxu0 0.0
    %1633 = vmatprep.subr.mxu0 0.0
    %1634 = vmatpush1.msra.mxu0 0.0
    %1635 = vmatprep.subr.mxu0 0.0
    %1636 = vmatpush1.msra.mxu0 0.0
    %1637 = vmatprep.subr.mxu0 0.0
    %1638 = vmatpush1.msra.mxu0 0.0
    %1639 = vmatprep.subr.mxu0 0.0
    %1640 = vmatpush1.msra.mxu0 0.0
    %1641 = vmatprep.subr.mxu0 0.0
    %1642 = vmatpush1.msra.mxu0 0.0
    %1643 = vmatprep.subr.mxu0 0.0
    %1644 = vmatpush1.msra.mxu0 0.0
    %1645 = vmatprep.subr.mxu0 0.0
    %1646 = vmatpush1.msra.mxu0 0.0
    %1647 = vmatprep.subr.mxu0 0.0
    %1648 = vmatpush1.msra.mxu0 0.0
    %1649 = vmatprep.subr.mxu0 0.0
    %1650 = vmatpush1.msra.mxu0 0.0
    %1651 = vmatprep.subr.mxu0 0.0
    %1652 = vmatpush1.msra.mxu0 0.0
    %1653 = vmatprep.subr.mxu0 0.0
    %1654 = vmatpush1.msra.mxu0 0.0
    %1655 = vmatprep.subr.mxu0 0.0
    %1656 = vmatpush1.msra.mxu0 0.0
    %1657 = vmatprep.subr.mxu0 0.0
    %1658 = vmatpush1.msra.mxu0 0.0
    %1659 = vmatprep.subr.mxu0 0.0
    %1660 = vmatpush1.msra.mxu0 0.0
    %1661 = vmatprep.subr.mxu0 0.0
    %1662 = vmatpush1.msra.mxu0 0.0
    %1663 = vmatprep.subr.mxu0 0.0
    %1664 = vmatpush1.msra.mxu0 0.0
    %1665 = vmatprep.subr.mxu0 0.0
    %1666 = vmatpush1.msra.mxu0 0.0
    %1667 = vmatprep.subr.mxu0 0.0
    %1668 = vmatpush1.msra.mxu0 0.0
    %1669 = vmatprep.subr.mxu0 0.0
    %1670 = vmatpush1.msra.mxu0 0.0
    %1671 = vmatprep.subr.mxu0 0.0
    %1672 = vmatpush1.msra.mxu0 0.0
    %1673 = vmatprep.mubr.f32.mxu0 0.0
    %1674 = vmatmul.mubr.f32.gmra.mrb[0].mxu0 %v1607
    %v1675 = vpop.f32.mrb[0].mxu0
    %v1676 = vadd.f32 0.0, %v1675
    %v1677 = vpop.f32.mrb[0].mxu0
    %1678 = vdwg.mxu0
    %v1679 = vadd.f32 %v1597, %v1676
    %vm1680 = vcmask 41984
    %1681 = vst.msk [vmem:[#allocation4] sm:$0x3] %vm1680, %v1679
    // Predicated region
    $region30: #{dqn_forward.1} parent=1 // pred_check
      _
    $region31: #{dqn_forward.1} parent=1 // pred_check_branch
      %1683 = sbr.rel (0) target = $region33
    $region32: #{dqn_forward.1} parent=1 // pred_region
      %s1685 = ssub.s32 32, 32
      %1686 = vsyncadd [#allocation5], %s1685
      %s1688 = sshll.u32 [#allocation4], 4
      %s1689 = int_to_ptr.vmem [resolvable:$true] %s1688
      %1691 = dma.vmem_to_hbm [thread:$0]  %s1689, 32, %s7, [#allocation5]
    $region33: #{dqn_forward.1} parent=1 // pred_fallthru
      _
    // Predicated region
    $region34: #{dqn_forward.1} parent=1 // pred_check
      _
    $region35: #{dqn_forward.1} parent=1 // pred_check_branch
      %1693 = sbr.rel (0) target = $region37
    $region36: #{dqn_forward.1} parent=1 // pred_region
      %1694 = dma.done [#allocation5], 32
    $region37: #{dqn_forward.1} parent=1 // pred_fallthru
      _
    %1695 = vsyncpa [#allocation5], 1

</llo_original>
